<compile_context>
chip_gen: v5e
topology: v5e:2x2
jax: 0.10.0
libtpu: 0.0.40
codegen_flags: <defaults>
</compile_context>

<pallas_src>
from functools import partial

import jax
import jax.numpy as jnp
from jax.experimental import pallas as pl
from jax.experimental.pallas import tpu as pltpu


def _round_up(v, m):
    return ((v + m - 1) // m) * m


def _pad_to(a, shape):
    return jnp.pad(a, [(0, s - d) for d, s in zip(a.shape, shape)])


def rnn_fc_kernel(x_ref, wih0_ref, whh0_ref, b0_ref, w1s_ref, b1_ref,
                  wfc_ref, bfc_ref, out_ref):
    # x_ref:    (S*Bp, Ip)  bf16, time-major, batch/lane padded
    # wih0_ref: (Ip, Hp)    bf16, W_ih0^T (padded)
    # whh0_ref: (Hp, Hp)    bf16, W_hh0^T (padded)
    # b0_ref:   (1, Hp)     f32,  b_ih0 + b_hh0 (padded)
    # w1s_ref:  (2*Hp, Hp)  bf16, [W_ih1^T ; W_hh1^T] stacked (padded)
    # b1_ref:   (1, Hp)     f32,  b_ih1 + b_hh1 (padded)
    # wfc_ref:  (S*Hp, Cp)  bf16, W_fc^T grouped per timestep (padded)
    # bfc_ref:  (1, Cp)     f32
    # out_ref:  (Bp, Cp)    f32
    Hp = whh0_ref.shape[1]
    Bp, Cp = out_ref.shape
    S = x_ref.shape[0] // Bp

    # Layer-0 input projection for all timesteps at once (off the serial chain),
    # fused layer-0 bias folded in.  bf16 x bf16 -> f32 accumulate.
    xproj = (jnp.dot(x_ref[...], wih0_ref[...],
                     preferred_element_type=jnp.float32)
             + b0_ref[...])                               # (S*Bp, Hp) f32

    # Single-vreg broadcast, hoisted.
    b1 = jnp.broadcast_to(b1_ref[...], (Bp, Hp))

    h0 = jnp.zeros((Bp, Hp), jnp.float32)
    h1 = jnp.zeros((Bp, Hp), jnp.float32)
    acc = jnp.zeros((Bp, Cp), jnp.float32)

    # S is small and static: full unroll gives the scheduler cross-step
    # visibility (overlap MXU pushes with tanh on the EUP and VPU adds).
    for t in range(S):
        xp_t = xproj[t * Bp:(t + 1) * Bp, :]              # static, aligned slice
        # Layer 0 recurrence (bf16 LHS cast right before the dot, f32 tanh).
        h0 = jnp.tanh(xp_t + jnp.dot(h0.astype(jnp.bfloat16), whh0_ref[...],
                                     preferred_element_type=jnp.float32))
        # Layer 1: fused [h0_t, h1_{t-1}] @ [W_ih1^T ; W_hh1^T].
        h01 = jnp.concatenate([h0, h1], axis=1).astype(jnp.bfloat16)
        h1 = jnp.tanh(jnp.dot(h01, w1s_ref[...],
                              preferred_element_type=jnp.float32) + b1)
        # Interleaved FC accumulation: independent of later recurrence steps,
        # static lane/sublane-aligned slice of the per-timestep-grouped W_fc^T.
        acc = acc + jnp.dot(h1.astype(jnp.bfloat16),
                            wfc_ref[t * Hp:(t + 1) * Hp, :],
                            preferred_element_type=jnp.float32)

    out_ref[...] = acc + bfc_ref[...]


def prepare_params(params, seq_len):
    """One-time weight prep: transpose, zero-pad to (8,128) tiles, cast to bf16.

    Zero padding keeps padded hidden lanes exactly 0 through tanh(0)=0 and
    padded wfc rows contribute nothing to the accumulator.
    """
    (wih0, whh0, bih0, bhh0, wih1, whh1, bih1, bhh1, wfc, bfc) = params
    H = whh0.shape[0]
    I = wih0.shape[1]
    C = wfc.shape[0]
    Ip = _round_up(I, 128)
    Hp = _round_up(H, 128)
    Cp = _round_up(C, 128)

    wih0_t = _pad_to(wih0.T, (Ip, Hp)).astype(jnp.bfloat16)
    whh0_t = _pad_to(whh0.T, (Hp, Hp)).astype(jnp.bfloat16)
    b0 = _pad_to((bih0 + bhh0).reshape(1, H), (1, Hp)).astype(jnp.float32)

    w1s = jnp.concatenate(
        [_pad_to(wih1.T, (Hp, Hp)), _pad_to(whh1.T, (Hp, Hp))],
        axis=0).astype(jnp.bfloat16)
    b1 = _pad_to((bih1 + bhh1).reshape(1, H), (1, Hp)).astype(jnp.float32)

    # FC: (C, S*H) -> (S*Hp, Cp), rows grouped per timestep so the kernel's
    # per-step h1_t slices match the PyTorch flatten order.
    wfc_shc = wfc.T.reshape(seq_len, H, C)
    wfc_p = _pad_to(wfc_shc, (seq_len, Hp, Cp)).reshape(
        seq_len * Hp, Cp).astype(jnp.bfloat16)
    bfc_p = _pad_to(bfc.reshape(1, C), (1, Cp)).astype(jnp.float32)

    return (wih0_t, whh0_t, b0, w1s, b1, wfc_p, bfc_p)


@partial(jax.jit, static_argnums=2)
def rnn_forward(x_bsi, prepped, num_classes):
    """x_bsi: (B, S, I) batch_first, like the PyTorch module. Returns (B, C)."""
    wih0_t, whh0_t, b0, w1s, b1, wfc_p, bfc_p = prepped
    B, S, I = x_bsi.shape
    Ip, Hp = wih0_t.shape
    Cp = bfc_p.shape[1]
    Bp = _round_up(B, 8)

    # Per-call input transform only: time-major, zero-pad, flatten, cast bf16.
    x_sbi = jnp.transpose(x_bsi, (1, 0, 2))
    x_p = _pad_to(x_sbi, (S, Bp, Ip)).reshape(S * Bp, Ip).astype(jnp.bfloat16)

    vmem = pl.BlockSpec(memory_space=pltpu.MemorySpace.VMEM)
    out_p = pl.pallas_call(
        rnn_fc_kernel,
        out_shape=jax.ShapeDtypeStruct((Bp, Cp), jnp.float32),
        in_specs=[vmem] * 8,
        out_specs=vmem,
    )(x_p, wih0_t, whh0_t, b0, w1s, b1, wfc_p, bfc_p)
    return out_p[:B, :num_classes]


def rnn_reference(x_bsi, params):
    """Pure-JAX reference mirroring torch.nn.RNN(num_layers=2, batch_first) + fc."""
    (wih0, whh0, bih0, bhh0, wih1, whh1, bih1, bhh1, wfc, bfc) = params
    B, S, I = x_bsi.shape
    H = whh0.shape[0]
    h0 = jnp.zeros((B, H), jnp.float32)
    h1 = jnp.zeros((B, H), jnp.float32)
    outs = []
    for t in range(S):
        x_t = x_bsi[:, t, :]
        h0 = jnp.tanh(x_t @ wih0.T + bih0 + h0 @ whh0.T + bhh0)
        h1 = jnp.tanh(h0 @ wih1.T + bih1 + h1 @ whh1.T + bhh1)
        outs.append(h1)
    seq_out = jnp.stack(outs, axis=1)              # (B, S, H)
    flat = seq_out.reshape(B, S * H)
    return flat @ wfc.T + bfc


def init_params(key, input_size, hidden_size, seq_len, num_classes):
    k = 1.0 / jnp.sqrt(hidden_size)
    keys = jax.random.split(key, 10)

    def u(kk, shape):
        return jax.random.uniform(kk, shape, jnp.float32, -k, k)

    wih0 = u(keys[0], (hidden_size, input_size))
    whh0 = u(keys[1], (hidden_size, hidden_size))
    bih0 = u(keys[2], (1, hidden_size))
    bhh0 = u(keys[3], (1, hidden_size))
    wih1 = u(keys[4], (hidden_size, hidden_size))
    whh1 = u(keys[5], (hidden_size, hidden_size))
    bih1 = u(keys[6], (1, hidden_size))
    bhh1 = u(keys[7], (1, hidden_size))
    wfc = u(keys[8], (num_classes, hidden_size * seq_len))
    bfc = u(keys[9], (1, num_classes))
    return (wih0, whh0, bih0, bhh0, wih1, whh1, bih1, bhh1, wfc, bfc)


if __name__ == "__main__":
    # Small shapes consistent with the module's forward:
    batch, seq_len, input_size = 2, 8, 28
    hidden_size, num_layers, num_classes = 32, 2, 10

    key = jax.random.PRNGKey(0)
    kx, kp = jax.random.split(key)
    x = jax.random.normal(kx, (batch, seq_len, input_size), jnp.float32)
    params = init_params(kp, input_size, hidden_size, seq_len, num_classes)

    # One-time weight preparation (padding / transpose / bf16 cast).
    prepped = prepare_params(params, seq_len)

    out = rnn_forward(x, prepped, num_classes)
    out = jax.block_until_ready(out)

    ref = rnn_reference(x, params)
    assert out.shape == (batch, num_classes)
    # Tolerance accounts for the intentional bf16 MXU operands (weights + LHS
    # casts) vs. the f32 XLA reference; structural bugs would produce errors
    # orders of magnitude larger.
    assert jnp.allclose(out, ref, atol=5e-2, rtol=5e-2), "mismatch vs. JAX reference"

    print("KERNEL_OK")
</pallas_src>

<mosaic_0001>
module attributes {stable_mosaic.version = 11 : i64} {
  func.func @rnn_fc_kernel(%arg0: memref<64x128xbf16, #tpu.memory_space<vmem>>, %arg1: memref<128x128xbf16, #tpu.memory_space<vmem>>, %arg2: memref<128x128xbf16, #tpu.memory_space<vmem>>, %arg3: memref<1x128xf32, #tpu.memory_space<vmem>>, %arg4: memref<256x128xbf16, #tpu.memory_space<vmem>>, %arg5: memref<1x128xf32, #tpu.memory_space<vmem>>, %arg6: memref<1024x128xbf16, #tpu.memory_space<vmem>>, %arg7: memref<1x128xf32, #tpu.memory_space<vmem>>, %arg8: memref<8x128xf32, #tpu.memory_space<vmem>>) attributes {dimension_semantics = [], scalar_prefetch = 0 : i64, scratch_operands = 0 : i64, tpu.core_type = #tpu.core_type<tc>} {
    %c0 = arith.constant 0 : index
    %c0_0 = arith.constant 0 : index
    %0 = vector.load %arg0[%c0, %c0_0] : memref<64x128xbf16, #tpu.memory_space<vmem>>, vector<64x128xbf16>
    %c0_1 = arith.constant 0 : index
    %c0_2 = arith.constant 0 : index
    %1 = vector.load %arg1[%c0_1, %c0_2] : memref<128x128xbf16, #tpu.memory_space<vmem>>, vector<128x128xbf16>
    %cst = arith.constant dense<0.000000e+00> : vector<64x128xf32>
    %2 = tpu.matmul %0, %1, %cst {dimension_numbers = #tpu.dot_dimension_numbers<[1], [0], [0], [1], [0, 0, 1, 1], [], []>} : vector<64x128xbf16>, vector<128x128xbf16>, vector<64x128xf32> -> vector<64x128xf32>
    %c0_3 = arith.constant 0 : index
    %c0_4 = arith.constant 0 : index
    %3 = vector.load %arg3[%c0_3, %c0_4] : memref<1x128xf32, #tpu.memory_space<vmem>>, vector<1x128xf32>
    %4 = vector.broadcast %3 : vector<1x128xf32> to vector<64x128xf32>
    %5 = arith.addf %2, %4 : vector<64x128xf32>
    %c0_5 = arith.constant 0 : index
    %c0_6 = arith.constant 0 : index
    %6 = vector.load %arg5[%c0_5, %c0_6] : memref<1x128xf32, #tpu.memory_space<vmem>>, vector<1x128xf32>
    %7 = vector.shape_cast %6 : vector<1x128xf32> to vector<1x128xf32>
    %8 = vector.broadcast %7 : vector<1x128xf32> to vector<8x128xf32>
    %cst_7 = arith.constant 0.000000e+00 : f32
    %9 = vector.broadcast %cst_7 : f32 to vector<8x128xf32>
    %cst_8 = arith.constant 0.000000e+00 : f32
    %10 = vector.broadcast %cst_8 : f32 to vector<8x128xf32>
    %cst_9 = arith.constant 0.000000e+00 : f32
    %11 = vector.broadcast %cst_9 : f32 to vector<8x128xf32>
    %12 = vector.extract_strided_slice %5 {offsets = [0, 0], sizes = [8, 128], strides = [1, 1]} : vector<64x128xf32> to vector<8x128xf32>
    %13 = arith.truncf %9 : vector<8x128xf32> to vector<8x128xbf16>
    %c0_10 = arith.constant 0 : index
    %c0_11 = arith.constant 0 : index
    %14 = vector.load %arg2[%c0_10, %c0_11] : memref<128x128xbf16, #tpu.memory_space<vmem>>, vector<128x128xbf16>
    %cst_12 = arith.constant dense<0.000000e+00> : vector<8x128xf32>
    %15 = tpu.matmul %13, %14, %cst_12 {dimension_numbers = #tpu.dot_dimension_numbers<[1], [0], [0], [1], [0, 0, 1, 1], [], []>} : vector<8x128xbf16>, vector<128x128xbf16>, vector<8x128xf32> -> vector<8x128xf32>
    %16 = arith.addf %12, %15 : vector<8x128xf32>
    %17 = math.tanh %16 : vector<8x128xf32>
    %18 = tpu.concatenate %17, %10 in 1 : vector<8x128xf32>, vector<8x128xf32> -> vector<8x256xf32>
    %19 = arith.truncf %18 : vector<8x256xf32> to vector<8x256xbf16>
    %c0_13 = arith.constant 0 : index
    %c0_14 = arith.constant 0 : index
    %20 = vector.load %arg4[%c0_13, %c0_14] : memref<256x128xbf16, #tpu.memory_space<vmem>>, vector<256x128xbf16>
    %cst_15 = arith.constant dense<0.000000e+00> : vector<8x128xf32>
    %21 = tpu.matmul %19, %20, %cst_15 {dimension_numbers = #tpu.dot_dimension_numbers<[1], [0], [0], [1], [0, 0, 1, 1], [], []>} : vector<8x256xbf16>, vector<256x128xbf16>, vector<8x128xf32> -> vector<8x128xf32>
    %22 = arith.addf %21, %8 : vector<8x128xf32>
    %23 = math.tanh %22 : vector<8x128xf32>
    %24 = arith.truncf %23 : vector<8x128xf32> to vector<8x128xbf16>
    %c0_16 = arith.constant 0 : index
    %c0_17 = arith.constant 0 : index
    %25 = vector.load %arg6[%c0_16, %c0_17] : memref<1024x128xbf16, #tpu.memory_space<vmem>>, vector<128x128xbf16>
    %cst_18 = arith.constant dense<0.000000e+00> : vector<8x128xf32>
    %26 = tpu.matmul %24, %25, %cst_18 {dimension_numbers = #tpu.dot_dimension_numbers<[1], [0], [0], [1], [0, 0, 1, 1], [], []>} : vector<8x128xbf16>, vector<128x128xbf16>, vector<8x128xf32> -> vector<8x128xf32>
    %27 = arith.addf %11, %26 : vector<8x128xf32>
    %28 = vector.extract_strided_slice %5 {offsets = [8, 0], sizes = [8, 128], strides = [1, 1]} : vector<64x128xf32> to vector<8x128xf32>
    %29 = arith.truncf %17 : vector<8x128xf32> to vector<8x128xbf16>
    %c0_19 = arith.constant 0 : index
    %c0_20 = arith.constant 0 : index
    %30 = vector.load %arg2[%c0_19, %c0_20] : memref<128x128xbf16, #tpu.memory_space<vmem>>, vector<128x128xbf16>
    %cst_21 = arith.constant dense<0.000000e+00> : vector<8x128xf32>
    %31 = tpu.matmul %29, %30, %cst_21 {dimension_numbers = #tpu.dot_dimension_numbers<[1], [0], [0], [1], [0, 0, 1, 1], [], []>} : vector<8x128xbf16>, vector<128x128xbf16>, vector<8x128xf32> -> vector<8x128xf32>
    %32 = arith.addf %28, %31 : vector<8x128xf32>
    %33 = math.tanh %32 : vector<8x128xf32>
    %34 = tpu.concatenate %33, %23 in 1 : vector<8x128xf32>, vector<8x128xf32> -> vector<8x256xf32>
    %35 = arith.truncf %34 : vector<8x256xf32> to vector<8x256xbf16>
    %c0_22 = arith.constant 0 : index
    %c0_23 = arith.constant 0 : index
    %36 = vector.load %arg4[%c0_22, %c0_23] : memref<256x128xbf16, #tpu.memory_space<vmem>>, vector<256x128xbf16>
    %cst_24 = arith.constant dense<0.000000e+00> : vector<8x128xf32>
    %37 = tpu.matmul %35, %36, %cst_24 {dimension_numbers = #tpu.dot_dimension_numbers<[1], [0], [0], [1], [0, 0, 1, 1], [], []>} : vector<8x256xbf16>, vector<256x128xbf16>, vector<8x128xf32> -> vector<8x128xf32>
    %38 = arith.addf %37, %8 : vector<8x128xf32>
    %39 = math.tanh %38 : vector<8x128xf32>
    %40 = arith.truncf %39 : vector<8x128xf32> to vector<8x128xbf16>
    %c128 = arith.constant 128 : index
    %c0_25 = arith.constant 0 : index
    %41 = vector.load %arg6[%c128, %c0_25] : memref<1024x128xbf16, #tpu.memory_space<vmem>>, vector<128x128xbf16>
    %cst_26 = arith.constant dense<0.000000e+00> : vector<8x128xf32>
    %42 = tpu.matmul %40, %41, %cst_26 {dimension_numbers = #tpu.dot_dimension_numbers<[1], [0], [0], [1], [0, 0, 1, 1], [], []>} : vector<8x128xbf16>, vector<128x128xbf16>, vector<8x128xf32> -> vector<8x128xf32>
    %43 = arith.addf %27, %42 : vector<8x128xf32>
    %44 = vector.extract_strided_slice %5 {offsets = [16, 0], sizes = [8, 128], strides = [1, 1]} : vector<64x128xf32> to vector<8x128xf32>
    %45 = arith.truncf %33 : vector<8x128xf32> to vector<8x128xbf16>
    %c0_27 = arith.constant 0 : index
    %c0_28 = arith.constant 0 : index
    %46 = vector.load %arg2[%c0_27, %c0_28] : memref<128x128xbf16, #tpu.memory_space<vmem>>, vector<128x128xbf16>
    %cst_29 = arith.constant dense<0.000000e+00> : vector<8x128xf32>
    %47 = tpu.matmul %45, %46, %cst_29 {dimension_numbers = #tpu.dot_dimension_numbers<[1], [0], [0], [1], [0, 0, 1, 1], [], []>} : vector<8x128xbf16>, vector<128x128xbf16>, vector<8x128xf32> -> vector<8x128xf32>
    %48 = arith.addf %44, %47 : vector<8x128xf32>
    %49 = math.tanh %48 : vector<8x128xf32>
    %50 = tpu.concatenate %49, %39 in 1 : vector<8x128xf32>, vector<8x128xf32> -> vector<8x256xf32>
    %51 = arith.truncf %50 : vector<8x256xf32> to vector<8x256xbf16>
    %c0_30 = arith.constant 0 : index
    %c0_31 = arith.constant 0 : index
    %52 = vector.load %arg4[%c0_30, %c0_31] : memref<256x128xbf16, #tpu.memory_space<vmem>>, vector<256x128xbf16>
    %cst_32 = arith.constant dense<0.000000e+00> : vector<8x128xf32>
    %53 = tpu.matmul %51, %52, %cst_32 {dimension_numbers = #tpu.dot_dimension_numbers<[1], [0], [0], [1], [0, 0, 1, 1], [], []>} : vector<8x256xbf16>, vector<256x128xbf16>, vector<8x128xf32> -> vector<8x128xf32>
    %54 = arith.addf %53, %8 : vector<8x128xf32>
    %55 = math.tanh %54 : vector<8x128xf32>
    %56 = arith.truncf %55 : vector<8x128xf32> to vector<8x128xbf16>
    %c256 = arith.constant 256 : index
    %c0_33 = arith.constant 0 : index
    %57 = vector.load %arg6[%c256, %c0_33] : memref<1024x128xbf16, #tpu.memory_space<vmem>>, vector<128x128xbf16>
    %cst_34 = arith.constant dense<0.000000e+00> : vector<8x128xf32>
    %58 = tpu.matmul %56, %57, %cst_34 {dimension_numbers = #tpu.dot_dimension_numbers<[1], [0], [0], [1], [0, 0, 1, 1], [], []>} : vector<8x128xbf16>, vector<128x128xbf16>, vector<8x128xf32> -> vector<8x128xf32>
    %59 = arith.addf %43, %58 : vector<8x128xf32>
    %60 = vector.extract_strided_slice %5 {offsets = [24, 0], sizes = [8, 128], strides = [1, 1]} : vector<64x128xf32> to vector<8x128xf32>
    %61 = arith.truncf %49 : vector<8x128xf32> to vector<8x128xbf16>
    %c0_35 = arith.constant 0 : index
    %c0_36 = arith.constant 0 : index
    %62 = vector.load %arg2[%c0_35, %c0_36] : memref<128x128xbf16, #tpu.memory_space<vmem>>, vector<128x128xbf16>
    %cst_37 = arith.constant dense<0.000000e+00> : vector<8x128xf32>
    %63 = tpu.matmul %61, %62, %cst_37 {dimension_numbers = #tpu.dot_dimension_numbers<[1], [0], [0], [1], [0, 0, 1, 1], [], []>} : vector<8x128xbf16>, vector<128x128xbf16>, vector<8x128xf32> -> vector<8x128xf32>
    %64 = arith.addf %60, %63 : vector<8x128xf32>
    %65 = math.tanh %64 : vector<8x128xf32>
    %66 = tpu.concatenate %65, %55 in 1 : vector<8x128xf32>, vector<8x128xf32> -> vector<8x256xf32>
    %67 = arith.truncf %66 : vector<8x256xf32> to vector<8x256xbf16>
    %c0_38 = arith.constant 0 : index
    %c0_39 = arith.constant 0 : index
    %68 = vector.load %arg4[%c0_38, %c0_39] : memref<256x128xbf16, #tpu.memory_space<vmem>>, vector<256x128xbf16>
    %cst_40 = arith.constant dense<0.000000e+00> : vector<8x128xf32>
    %69 = tpu.matmul %67, %68, %cst_40 {dimension_numbers = #tpu.dot_dimension_numbers<[1], [0], [0], [1], [0, 0, 1, 1], [], []>} : vector<8x256xbf16>, vector<256x128xbf16>, vector<8x128xf32> -> vector<8x128xf32>
    %70 = arith.addf %69, %8 : vector<8x128xf32>
    %71 = math.tanh %70 : vector<8x128xf32>
    %72 = arith.truncf %71 : vector<8x128xf32> to vector<8x128xbf16>
    %c384 = arith.constant 384 : index
    %c0_41 = arith.constant 0 : index
    %73 = vector.load %arg6[%c384, %c0_41] : memref<1024x128xbf16, #tpu.memory_space<vmem>>, vector<128x128xbf16>
    %cst_42 = arith.constant dense<0.000000e+00> : vector<8x128xf32>
    %74 = tpu.matmul %72, %73, %cst_42 {dimension_numbers = #tpu.dot_dimension_numbers<[1], [0], [0], [1], [0, 0, 1, 1], [], []>} : vector<8x128xbf16>, vector<128x128xbf16>, vector<8x128xf32> -> vector<8x128xf32>
    %75 = arith.addf %59, %74 : vector<8x128xf32>
    %76 = vector.extract_strided_slice %5 {offsets = [32, 0], sizes = [8, 128], strides = [1, 1]} : vector<64x128xf32> to vector<8x128xf32>
    %77 = arith.truncf %65 : vector<8x128xf32> to vector<8x128xbf16>
    %c0_43 = arith.constant 0 : index
    %c0_44 = arith.constant 0 : index
    %78 = vector.load %arg2[%c0_43, %c0_44] : memref<128x128xbf16, #tpu.memory_space<vmem>>, vector<128x128xbf16>
    %cst_45 = arith.constant dense<0.000000e+00> : vector<8x128xf32>
    %79 = tpu.matmul %77, %78, %cst_45 {dimension_numbers = #tpu.dot_dimension_numbers<[1], [0], [0], [1], [0, 0, 1, 1], [], []>} : vector<8x128xbf16>, vector<128x128xbf16>, vector<8x128xf32> -> vector<8x128xf32>
    %80 = arith.addf %76, %79 : vector<8x128xf32>
    %81 = math.tanh %80 : vector<8x128xf32>
    %82 = tpu.concatenate %81, %71 in 1 : vector<8x128xf32>, vector<8x128xf32> -> vector<8x256xf32>
    %83 = arith.truncf %82 : vector<8x256xf32> to vector<8x256xbf16>
    %c0_46 = arith.constant 0 : index
    %c0_47 = arith.constant 0 : index
    %84 = vector.load %arg4[%c0_46, %c0_47] : memref<256x128xbf16, #tpu.memory_space<vmem>>, vector<256x128xbf16>
    %cst_48 = arith.constant dense<0.000000e+00> : vector<8x128xf32>
    %85 = tpu.matmul %83, %84, %cst_48 {dimension_numbers = #tpu.dot_dimension_numbers<[1], [0], [0], [1], [0, 0, 1, 1], [], []>} : vector<8x256xbf16>, vector<256x128xbf16>, vector<8x128xf32> -> vector<8x128xf32>
    %86 = arith.addf %85, %8 : vector<8x128xf32>
    %87 = math.tanh %86 : vector<8x128xf32>
    %88 = arith.truncf %87 : vector<8x128xf32> to vector<8x128xbf16>
    %c512 = arith.constant 512 : index
    %c0_49 = arith.constant 0 : index
    %89 = vector.load %arg6[%c512, %c0_49] : memref<1024x128xbf16, #tpu.memory_space<vmem>>, vector<128x128xbf16>
    %cst_50 = arith.constant dense<0.000000e+00> : vector<8x128xf32>
    %90 = tpu.matmul %88, %89, %cst_50 {dimension_numbers = #tpu.dot_dimension_numbers<[1], [0], [0], [1], [0, 0, 1, 1], [], []>} : vector<8x128xbf16>, vector<128x128xbf16>, vector<8x128xf32> -> vector<8x128xf32>
    %91 = arith.addf %75, %90 : vector<8x128xf32>
    %92 = vector.extract_strided_slice %5 {offsets = [40, 0], sizes = [8, 128], strides = [1, 1]} : vector<64x128xf32> to vector<8x128xf32>
    %93 = arith.truncf %81 : vector<8x128xf32> to vector<8x128xbf16>
    %c0_51 = arith.constant 0 : index
    %c0_52 = arith.constant 0 : index
    %94 = vector.load %arg2[%c0_51, %c0_52] : memref<128x128xbf16, #tpu.memory_space<vmem>>, vector<128x128xbf16>
    %cst_53 = arith.constant dense<0.000000e+00> : vector<8x128xf32>
    %95 = tpu.matmul %93, %94, %cst_53 {dimension_numbers = #tpu.dot_dimension_numbers<[1], [0], [0], [1], [0, 0, 1, 1], [], []>} : vector<8x128xbf16>, vector<128x128xbf16>, vector<8x128xf32> -> vector<8x128xf32>
    %96 = arith.addf %92, %95 : vector<8x128xf32>
    %97 = math.tanh %96 : vector<8x128xf32>
    %98 = tpu.concatenate %97, %87 in 1 : vector<8x128xf32>, vector<8x128xf32> -> vector<8x256xf32>
    %99 = arith.truncf %98 : vector<8x256xf32> to vector<8x256xbf16>
    %c0_54 = arith.constant 0 : index
    %c0_55 = arith.constant 0 : index
    %100 = vector.load %arg4[%c0_54, %c0_55] : memref<256x128xbf16, #tpu.memory_space<vmem>>, vector<256x128xbf16>
    %cst_56 = arith.constant dense<0.000000e+00> : vector<8x128xf32>
    %101 = tpu.matmul %99, %100, %cst_56 {dimension_numbers = #tpu.dot_dimension_numbers<[1], [0], [0], [1], [0, 0, 1, 1], [], []>} : vector<8x256xbf16>, vector<256x128xbf16>, vector<8x128xf32> -> vector<8x128xf32>
    %102 = arith.addf %101, %8 : vector<8x128xf32>
    %103 = math.tanh %102 : vector<8x128xf32>
    %104 = arith.truncf %103 : vector<8x128xf32> to vector<8x128xbf16>
    %c640 = arith.constant 640 : index
    %c0_57 = arith.constant 0 : index
    %105 = vector.load %arg6[%c640, %c0_57] : memref<1024x128xbf16, #tpu.memory_space<vmem>>, vector<128x128xbf16>
    %cst_58 = arith.constant dense<0.000000e+00> : vector<8x128xf32>
    %106 = tpu.matmul %104, %105, %cst_58 {dimension_numbers = #tpu.dot_dimension_numbers<[1], [0], [0], [1], [0, 0, 1, 1], [], []>} : vector<8x128xbf16>, vector<128x128xbf16>, vector<8x128xf32> -> vector<8x128xf32>
    %107 = arith.addf %91, %106 : vector<8x128xf32>
    %108 = vector.extract_strided_slice %5 {offsets = [48, 0], sizes = [8, 128], strides = [1, 1]} : vector<64x128xf32> to vector<8x128xf32>
    %109 = arith.truncf %97 : vector<8x128xf32> to vector<8x128xbf16>
    %c0_59 = arith.constant 0 : index
    %c0_60 = arith.constant 0 : index
    %110 = vector.load %arg2[%c0_59, %c0_60] : memref<128x128xbf16, #tpu.memory_space<vmem>>, vector<128x128xbf16>
    %cst_61 = arith.constant dense<0.000000e+00> : vector<8x128xf32>
    %111 = tpu.matmul %109, %110, %cst_61 {dimension_numbers = #tpu.dot_dimension_numbers<[1], [0], [0], [1], [0, 0, 1, 1], [], []>} : vector<8x128xbf16>, vector<128x128xbf16>, vector<8x128xf32> -> vector<8x128xf32>
    %112 = arith.addf %108, %111 : vector<8x128xf32>
    %113 = math.tanh %112 : vector<8x128xf32>
    %114 = tpu.concatenate %113, %103 in 1 : vector<8x128xf32>, vector<8x128xf32> -> vector<8x256xf32>
    %115 = arith.truncf %114 : vector<8x256xf32> to vector<8x256xbf16>
    %c0_62 = arith.constant 0 : index
    %c0_63 = arith.constant 0 : index
    %116 = vector.load %arg4[%c0_62, %c0_63] : memref<256x128xbf16, #tpu.memory_space<vmem>>, vector<256x128xbf16>
    %cst_64 = arith.constant dense<0.000000e+00> : vector<8x128xf32>
    %117 = tpu.matmul %115, %116, %cst_64 {dimension_numbers = #tpu.dot_dimension_numbers<[1], [0], [0], [1], [0, 0, 1, 1], [], []>} : vector<8x256xbf16>, vector<256x128xbf16>, vector<8x128xf32> -> vector<8x128xf32>
    %118 = arith.addf %117, %8 : vector<8x128xf32>
    %119 = math.tanh %118 : vector<8x128xf32>
    %120 = arith.truncf %119 : vector<8x128xf32> to vector<8x128xbf16>
    %c768 = arith.constant 768 : index
    %c0_65 = arith.constant 0 : index
    %121 = vector.load %arg6[%c768, %c0_65] : memref<1024x128xbf16, #tpu.memory_space<vmem>>, vector<128x128xbf16>
    %cst_66 = arith.constant dense<0.000000e+00> : vector<8x128xf32>
    %122 = tpu.matmul %120, %121, %cst_66 {dimension_numbers = #tpu.dot_dimension_numbers<[1], [0], [0], [1], [0, 0, 1, 1], [], []>} : vector<8x128xbf16>, vector<128x128xbf16>, vector<8x128xf32> -> vector<8x128xf32>
    %123 = arith.addf %107, %122 : vector<8x128xf32>
    %124 = vector.extract_strided_slice %5 {offsets = [56, 0], sizes = [8, 128], strides = [1, 1]} : vector<64x128xf32> to vector<8x128xf32>
    %125 = arith.truncf %113 : vector<8x128xf32> to vector<8x128xbf16>
    %c0_67 = arith.constant 0 : index
    %c0_68 = arith.constant 0 : index
    %126 = vector.load %arg2[%c0_67, %c0_68] : memref<128x128xbf16, #tpu.memory_space<vmem>>, vector<128x128xbf16>
    %cst_69 = arith.constant dense<0.000000e+00> : vector<8x128xf32>
    %127 = tpu.matmul %125, %126, %cst_69 {dimension_numbers = #tpu.dot_dimension_numbers<[1], [0], [0], [1], [0, 0, 1, 1], [], []>} : vector<8x128xbf16>, vector<128x128xbf16>, vector<8x128xf32> -> vector<8x128xf32>
    %128 = arith.addf %124, %127 : vector<8x128xf32>
    %129 = math.tanh %128 : vector<8x128xf32>
    %130 = tpu.concatenate %129, %119 in 1 : vector<8x128xf32>, vector<8x128xf32> -> vector<8x256xf32>
    %131 = arith.truncf %130 : vector<8x256xf32> to vector<8x256xbf16>
    %c0_70 = arith.constant 0 : index
    %c0_71 = arith.constant 0 : index
    %132 = vector.load %arg4[%c0_70, %c0_71] : memref<256x128xbf16, #tpu.memory_space<vmem>>, vector<256x128xbf16>
    %cst_72 = arith.constant dense<0.000000e+00> : vector<8x128xf32>
    %133 = tpu.matmul %131, %132, %cst_72 {dimension_numbers = #tpu.dot_dimension_numbers<[1], [0], [0], [1], [0, 0, 1, 1], [], []>} : vector<8x256xbf16>, vector<256x128xbf16>, vector<8x128xf32> -> vector<8x128xf32>
    %134 = arith.addf %133, %8 : vector<8x128xf32>
    %135 = math.tanh %134 : vector<8x128xf32>
    %136 = arith.truncf %135 : vector<8x128xf32> to vector<8x128xbf16>
    %c896 = arith.constant 896 : index
    %c0_73 = arith.constant 0 : index
    %137 = vector.load %arg6[%c896, %c0_73] : memref<1024x128xbf16, #tpu.memory_space<vmem>>, vector<128x128xbf16>
    %cst_74 = arith.constant dense<0.000000e+00> : vector<8x128xf32>
    %138 = tpu.matmul %136, %137, %cst_74 {dimension_numbers = #tpu.dot_dimension_numbers<[1], [0], [0], [1], [0, 0, 1, 1], [], []>} : vector<8x128xbf16>, vector<128x128xbf16>, vector<8x128xf32> -> vector<8x128xf32>
    %139 = arith.addf %123, %138 : vector<8x128xf32>
    %c0_75 = arith.constant 0 : index
    %c0_76 = arith.constant 0 : index
    %140 = vector.load %arg7[%c0_75, %c0_76] : memref<1x128xf32, #tpu.memory_space<vmem>>, vector<1x128xf32>
    %141 = vector.broadcast %140 : vector<1x128xf32> to vector<8x128xf32>
    %142 = arith.addf %139, %141 : vector<8x128xf32>
    %c0_77 = arith.constant 0 : index
    %c0_78 = arith.constant 0 : index
    %143 = vector.load %arg8[%c0_77, %c0_78] : memref<8x128xf32, #tpu.memory_space<vmem>>, vector<8x128xf32>
    tpu.vector_store %arg8[%c0_77, %c0_78], %142 {strides = array<i32>} : memref<8x128xf32, #tpu.memory_space<vmem>>, vector<8x128xf32>,
    return
  }
}

</mosaic_0001>

<llo_original>
// kernel: rnn_forward.1
$region0: #{rnn_forward.1}
  #allocation0 [shape = 'u32[]', space=smem, size = 0x4, offset = 0x4, fixed_abs, tag = 'smem constant byte address 0x4 - core index']
  #allocation1 [shape = 'u32[72,128]{1,0:T(1,128)}', space=vmem, size = 0x9000, scoped, tag = 'internal scratch']
  %s0 = inlined_call_operand.vmem [shape: bf16[64,128], index: 0, kind: input, shape index: {}]
  %s1 = inlined_call_operand.vmem [shape: bf16[128,128], index: 1, kind: input, shape index: {}]
  %s2 = inlined_call_operand.hbm [shape: bf16[128,128], index: 2, kind: input, shape index: {}]
  %s3 = inlined_call_operand.vmem [shape: f32[1,128], index: 3, kind: input, shape index: {}]
  %s4 = inlined_call_operand.hbm [shape: bf16[256,128], index: 4, kind: input, shape index: {}]
  %s5 = inlined_call_operand.vmem [shape: f32[1,128], index: 5, kind: input, shape index: {}]
  %s6 = inlined_call_operand.hbm [shape: bf16[1024,128], index: 6, kind: input, shape index: {}]
  %s7 = inlined_call_operand.vmem [shape: f32[1,128], index: 7, kind: input, shape index: {}]
  %s8 = inlined_call_operand.vmem [shape: f32[8,128], index: 8, kind: output, shape index: {}]
  %s9 = sld [smem:[#allocation0]]
  $region54: #{rnn_forward.1} parent=0
    _
  %s11 = ssub.s32 1, %s9
  %s12 = scalar_select 0, %s11, %s9
  $region1: #{rnn_forward.1} parent=0
    #allocation2 [shape = 'u8[32768]{0}', space=vmem, size = 0x8000, scoped, tag = 'input window, operand 2, single buffered']
    #allocation3 [shape = 's32[1]{0}', space=sflag, size = 0x4, scoped, tag = 'scoped memory for rnn_forward.1']
    #allocation4 [shape = 'u8[65536]{0}', space=vmem, size = 0x10000, scoped, tag = 'input window, operand 4, single buffered']
    #allocation5 [shape = 's32[1]{0}', space=sflag, size = 0x4, scoped, tag = 'scoped memory for rnn_forward.1']
    #allocation6 [shape = 'u8[262144]{0}', space=vmem, size = 0x40000, scoped, tag = 'input window, operand 6, single buffered']
    %13 = vsyncpa [#allocation3], 0
    %14 = vsyncpa [#allocation5], 0
    // Predicated region
    $region2: #{rnn_forward.1} parent=1 // pred_check
      _
    $region3: #{rnn_forward.1} parent=1 // pred_check_branch
      %16 = sbr.rel (0) target = $region5
    $region4: #{rnn_forward.1} parent=1 // pred_region
      _
    $region5: #{rnn_forward.1} parent=1 // pred_fallthru
      _
    // Predicated region
    $region6: #{rnn_forward.1} parent=1 // pred_check
      _
    $region7: #{rnn_forward.1} parent=1 // pred_check_branch
      %18 = sbr.rel (0) target = $region9
    $region8: #{rnn_forward.1} parent=1 // pred_region
      _
    $region9: #{rnn_forward.1} parent=1 // pred_fallthru
      _
    // Predicated region
    $region10: #{rnn_forward.1} parent=1 // pred_check
      _
    $region11: #{rnn_forward.1} parent=1 // pred_check_branch
      %20 = sbr.rel (0) target = $region13
    $region12: #{rnn_forward.1} parent=1 // pred_region
      %22 = vsyncadd [#allocation3], 0
      %s23 = sshll.u32 %s2, 4
      %s24 = int_to_ptr.hbm [resolvable:$true] %s23
      %s25 = sshll.u32 [#allocation2], 4
      %s26 = int_to_ptr.vmem [resolvable:$true] %s25
      %31 = dma.hbm_to_vmem [thread:$0]  %s24, 1024, %s26, [#allocation3], 64, 64, 4
    $region13: #{rnn_forward.1} parent=1 // pred_fallthru
      _
    // Predicated region
    $region14: #{rnn_forward.1} parent=1 // pred_check
      _
    $region15: #{rnn_forward.1} parent=1 // pred_check_branch
      %33 = sbr.rel (0) target = $region17
    $region16: #{rnn_forward.1} parent=1 // pred_region
      _
    $region17: #{rnn_forward.1} parent=1 // pred_fallthru
      _
    // Predicated region
    $region18: #{rnn_forward.1} parent=1 // pred_check
      _
    $region19: #{rnn_forward.1} parent=1 // pred_check_branch
      %35 = sbr.rel (0) target = $region21
    $region20: #{rnn_forward.1} parent=1 // pred_region
      %37 = vsyncadd [#allocation5], 0
      %s38 = sshll.u32 %s4, 4
      %s39 = int_to_ptr.hbm [resolvable:$true] %s38
      %s40 = sshll.u32 [#allocation4], 4
      %s41 = int_to_ptr.vmem [resolvable:$true] %s40
      %46 = dma.hbm_to_vmem [thread:$0]  %s39, 2048, %s41, [#allocation5], 64, 64, 4
    $region21: #{rnn_forward.1} parent=1 // pred_fallthru
      _
    // Predicated region
    $region22: #{rnn_forward.1} parent=1 // pred_check
      _
    $region23: #{rnn_forward.1} parent=1 // pred_check_branch
      %48 = sbr.rel (0) target = $region25
    $region24: #{rnn_forward.1} parent=1 // pred_region
      _
    $region25: #{rnn_forward.1} parent=1 // pred_fallthru
      _
    // Predicated region
    $region26: #{rnn_forward.1} parent=1 // pred_check
      _
    $region27: #{rnn_forward.1} parent=1 // pred_check_branch
      %50 = sbr.rel (0) target = $region29
    $region28: #{rnn_forward.1} parent=1 // pred_region
      %52 = vsyncadd [#allocation5], 0
      %s53 = sshll.u32 %s6, 4
      %s54 = int_to_ptr.hbm [resolvable:$true] %s53
      %s55 = sshll.u32 [#allocation6], 4
      %s56 = int_to_ptr.vmem [resolvable:$true] %s55
      %61 = dma.hbm_to_vmem [thread:$0]  %s54, 8192, %s56, [#allocation5], 64, 64, 4
    $region29: #{rnn_forward.1} parent=1 // pred_fallthru
      _
    // Predicated region
    $region30: #{rnn_forward.1} parent=1 // pred_check
      _
    $region31: #{rnn_forward.1} parent=1 // pred_check_branch
      %63 = sbr.rel (0) target = $region33
    $region32: #{rnn_forward.1} parent=1 // pred_region
      _
    $region33: #{rnn_forward.1} parent=1 // pred_fallthru
      _
    // Predicated region
    $region34: #{rnn_forward.1} parent=1 // pred_check
      _
    $region35: #{rnn_forward.1} parent=1 // pred_check_branch
      %65 = sbr.rel (0) target = $region37
    $region36: #{rnn_forward.1} parent=1 // pred_region
      %67 = dma.done [#allocation3], 1024
    $region37: #{rnn_forward.1} parent=1 // pred_fallthru
      _
    // Predicated region
    $region38: #{rnn_forward.1} parent=1 // pred_check
      _
    $region39: #{rnn_forward.1} parent=1 // pred_check_branch
      %69 = sbr.rel (0) target = $region41
    $region40: #{rnn_forward.1} parent=1 // pred_region
      %71 = dma.done [#allocation5], 2048
    $region41: #{rnn_forward.1} parent=1 // pred_fallthru
      _
    // Predicated region
    $region42: #{rnn_forward.1} parent=1 // pred_check
      _
    $region43: #{rnn_forward.1} parent=1 // pred_check_branch
      %73 = sbr.rel (0) target = $region45
    $region44: #{rnn_forward.1} parent=1 // pred_region
      %75 = dma.done [#allocation5], 8192
    $region45: #{rnn_forward.1} parent=1 // pred_fallthru
      _
    %v77 = vld [vmem:[%s0] sm:$0xf]
    %v78 = vld [vmem:[%s0 + $0x4] sm:$0xf]
    %v79 = vld [vmem:[%s0 + $0x8] sm:$0xf]
    %v80 = vld [vmem:[%s0 + $0xc] sm:$0xf]
    %v81 = vld [vmem:[%s0 + $0x10] sm:$0xf]
    %v82 = vld [vmem:[%s0 + $0x14] sm:$0xf]
    %v83 = vld [vmem:[%s0 + $0x18] sm:$0xf]
    %v84 = vld [vmem:[%s0 + $0x1c] sm:$0xf]
    %v85 = vld [vmem:[%s1] sm:$0xf]
    %v86 = vld [vmem:[%s1 + $0x4] sm:$0xf]
    %v87 = vld [vmem:[%s1 + $0x8] sm:$0xf]
    %v88 = vld [vmem:[%s1 + $0xc] sm:$0xf]
    %v89 = vld [vmem:[%s1 + $0x10] sm:$0xf]
    %v90 = vld [vmem:[%s1 + $0x14] sm:$0xf]
    %v91 = vld [vmem:[%s1 + $0x18] sm:$0xf]
    %v92 = vld [vmem:[%s1 + $0x1c] sm:$0xf]
    %v93 = vld [vmem:[%s1 + $0x20] sm:$0xf]
    %v94 = vld [vmem:[%s1 + $0x24] sm:$0xf]
    %v95 = vld [vmem:[%s1 + $0x28] sm:$0xf]
    %v96 = vld [vmem:[%s1 + $0x2c] sm:$0xf]
    %v97 = vld [vmem:[%s1 + $0x30] sm:$0xf]
    %v98 = vld [vmem:[%s1 + $0x34] sm:$0xf]
    %v99 = vld [vmem:[%s1 + $0x38] sm:$0xf]
    %v100 = vld [vmem:[%s1 + $0x3c] sm:$0xf]
    %v101 = vld [vmem:[%s3] sm:$0x1]
    %v103 = vperm.slane %v101, 0
    %v113 = vunpack.c.l.b16 %v77
    %v114 = vunpack.c.l.b16 %v78
    %v115 = vunpack.c.l.b16 %v79
    %v116 = vunpack.c.l.b16 %v80
    %v117 = vunpack.c.l.b16 %v81
    %v118 = vunpack.c.l.b16 %v82
    %v119 = vunpack.c.l.b16 %v83
    %v120 = vunpack.c.l.b16 %v84
    %v121 = vpack.c.b16 %v114, %v113
    %v122 = vpack.c.b16 %v116, %v115
    %v123 = vpack.c.b16 %v118, %v117
    %v124 = vpack.c.b16 %v120, %v119
    %v145 = vunpack.c.l.b16 %v85
    %v146 = vunpack.c.l.b16 %v86
    %v147 = vunpack.c.l.b16 %v87
    %v148 = vunpack.c.l.b16 %v88
    %v149 = vunpack.c.l.b16 %v89
    %v150 = vunpack.c.l.b16 %v90
    %v151 = vunpack.c.l.b16 %v91
    %v152 = vunpack.c.l.b16 %v92
    %v153 = vunpack.c.l.b16 %v93
    %v154 = vunpack.c.l.b16 %v94
    %v155 = vunpack.c.l.b16 %v95
    %v156 = vunpack.c.l.b16 %v96
    %v157 = vunpack.c.l.b16 %v97
    %v158 = vunpack.c.l.b16 %v98
    %v159 = vunpack.c.l.b16 %v99
    %v160 = vunpack.c.l.b16 %v100
    %v161 = vpack.c.b16 %v146, %v145
    %v162 = vpack.c.b16 %v148, %v147
    %v163 = vpack.c.b16 %v150, %v149
    %v164 = vpack.c.b16 %v152, %v151
    %v165 = vpack.c.b16 %v154, %v153
    %v166 = vpack.c.b16 %v156, %v155
    %v167 = vpack.c.b16 %v158, %v157
    %v168 = vpack.c.b16 %v160, %v159
    %177 = vmatpush.bf16.msra.mxu0 %v168
    %178 = vmatpush.bf16.msra.mxu0 %v167
    %179 = vmatpush.bf16.msra.mxu0 %v166
    %180 = vmatpush.bf16.msra.mxu0 %v165
    %181 = vmatpush.bf16.msra.mxu0 %v164
    %182 = vmatpush.bf16.msra.mxu0 %v163
    %183 = vmatpush.bf16.msra.mxu0 %v162
    %184 = vmatpush.bf16.msra.mxu0 %v161
    %185 = vmatmul.bf16.gmra.mxu0 %v121
    %v186 = vpop.f32.mrf.mxu0
    %v187 = vadd.f32 %v103, %v186
    %v188 = vpop.f32.mrf.mxu0
    %v189 = vadd.f32 %v103, %v188
    %190 = vmatmul.bf16.gmra.mxu0 %v122
    %v191 = vpop.f32.mrf.mxu0
    %v192 = vadd.f32 %v103, %v191
    %v193 = vpop.f32.mrf.mxu0
    %v194 = vadd.f32 %v103, %v193
    %195 = vmatmul.bf16.gmra.mxu0 %v123
    %v196 = vpop.f32.mrf.mxu0
    %v197 = vadd.f32 %v103, %v196
    %v198 = vpop.f32.mrf.mxu0
    %v199 = vadd.f32 %v103, %v198
    %200 = vmatmul.bf16.gmra.mxu0 %v124
    %v201 = vpop.f32.mrf.mxu0
    %v202 = vadd.f32 %v103, %v201
    %v203 = vpop.f32.mrf.mxu0
    %v204 = vadd.f32 %v103, %v203
    %205 = vdwg.mxu0
    %v206 = vld [vmem:[%s5] sm:$0x1]
    %v208 = vperm.slane %v206, 0
    %v210 = vld [vmem:[#allocation2] sm:$0xf]
    %v211 = vld [vmem:[#allocation2 + $0x4] sm:$0xf]
    %v212 = vld [vmem:[#allocation2 + $0x8] sm:$0xf]
    %v213 = vld [vmem:[#allocation2 + $0xc] sm:$0xf]
    %v214 = vld [vmem:[#allocation2 + $0x10] sm:$0xf]
    %v215 = vld [vmem:[#allocation2 + $0x14] sm:$0xf]
    %v216 = vld [vmem:[#allocation2 + $0x18] sm:$0xf]
    %v217 = vld [vmem:[#allocation2 + $0x1c] sm:$0xf]
    %v218 = vld [vmem:[#allocation2 + $0x20] sm:$0xf]
    %v219 = vld [vmem:[#allocation2 + $0x24] sm:$0xf]
    %v220 = vld [vmem:[#allocation2 + $0x28] sm:$0xf]
    %v221 = vld [vmem:[#allocation2 + $0x2c] sm:$0xf]
    %v222 = vld [vmem:[#allocation2 + $0x30] sm:$0xf]
    %v223 = vld [vmem:[#allocation2 + $0x34] sm:$0xf]
    %v224 = vld [vmem:[#allocation2 + $0x38] sm:$0xf]
    %v225 = vld [vmem:[#allocation2 + $0x3c] sm:$0xf]
    %v242 = vunpack.c.l.b16 %v210
    %v243 = vunpack.c.l.b16 %v211
    %v244 = vunpack.c.l.b16 %v212
    %v245 = vunpack.c.l.b16 %v213
    %v246 = vunpack.c.l.b16 %v214
    %v247 = vunpack.c.l.b16 %v215
    %v248 = vunpack.c.l.b16 %v216
    %v249 = vunpack.c.l.b16 %v217
    %v250 = vunpack.c.l.b16 %v218
    %v251 = vunpack.c.l.b16 %v219
    %v252 = vunpack.c.l.b16 %v220
    %v253 = vunpack.c.l.b16 %v221
    %v254 = vunpack.c.l.b16 %v222
    %v255 = vunpack.c.l.b16 %v223
    %v256 = vunpack.c.l.b16 %v224
    %v257 = vunpack.c.l.b16 %v225
    %v258 = vpack.c.b16 %v243, %v242
    %v259 = vpack.c.b16 %v245, %v244
    %v260 = vpack.c.b16 %v247, %v246
    %v261 = vpack.c.b16 %v249, %v248
    %v262 = vpack.c.b16 %v251, %v250
    %v263 = vpack.c.b16 %v253, %v252
    %v264 = vpack.c.b16 %v255, %v254
    %v265 = vpack.c.b16 %v257, %v256
    %274 = vmatpush.bf16.msra.mxu0 %v265
    %275 = vmatpush.bf16.msra.mxu0 %v264
    %276 = vmatpush.bf16.msra.mxu0 %v263
    %277 = vmatpush.bf16.msra.mxu0 %v262
    %278 = vmatpush.bf16.msra.mxu0 %v261
    %279 = vmatpush.bf16.msra.mxu0 %v260
    %280 = vmatpush.bf16.msra.mxu0 %v259
    %281 = vmatpush.bf16.msra.mxu0 %v258
    %282 = vmatmul.bf16.gmra.mxu0 0
    %v283 = vpop.f32.mrf.mxu0
    %v284 = vadd.f32 0.0, %v283
    %v285 = vpop.f32.mrf.mxu0
    %286 = vdwg.mxu0
    %v287 = vadd.f32 %v187, %v284
    %v288 = vtanh.pop %v287
    %v289 = vpack.c.bf16 %v288, %v288
    %v290 = vpack.c.bf16 0.0, 0.0
    %v291 = vld [vmem:[#allocation4] sm:$0xf]
    %v292 = vld [vmem:[#allocation4 + $0x4] sm:$0xf]
    %v293 = vld [vmem:[#allocation4 + $0x8] sm:$0xf]
    %v294 = vld [vmem:[#allocation4 + $0xc] sm:$0xf]
    %v295 = vld [vmem:[#allocation4 + $0x10] sm:$0xf]
    %v296 = vld [vmem:[#allocation4 + $0x14] sm:$0xf]
    %v297 = vld [vmem:[#allocation4 + $0x18] sm:$0xf]
    %v298 = vld [vmem:[#allocation4 + $0x1c] sm:$0xf]
    %v299 = vld [vmem:[#allocation4 + $0x20] sm:$0xf]
    %v300 = vld [vmem:[#allocation4 + $0x24] sm:$0xf]
    %v301 = vld [vmem:[#allocation4 + $0x28] sm:$0xf]
    %v302 = vld [vmem:[#allocation4 + $0x2c] sm:$0xf]
    %v303 = vld [vmem:[#allocation4 + $0x30] sm:$0xf]
    %v304 = vld [vmem:[#allocation4 + $0x34] sm:$0xf]
    %v305 = vld [vmem:[#allocation4 + $0x38] sm:$0xf]
    %v306 = vld [vmem:[#allocation4 + $0x3c] sm:$0xf]
    %v307 = vld [vmem:[#allocation4 + $0x40] sm:$0xf]
    %v308 = vld [vmem:[#allocation4 + $0x44] sm:$0xf]
    %v309 = vld [vmem:[#allocation4 + $0x48] sm:$0xf]
    %v310 = vld [vmem:[#allocation4 + $0x4c] sm:$0xf]
    %v311 = vld [vmem:[#allocation4 + $0x50] sm:$0xf]
    %v312 = vld [vmem:[#allocation4 + $0x54] sm:$0xf]
    %v313 = vld [vmem:[#allocation4 + $0x58] sm:$0xf]
    %v314 = vld [vmem:[#allocation4 + $0x5c] sm:$0xf]
    %v315 = vld [vmem:[#allocation4 + $0x60] sm:$0xf]
    %v316 = vld [vmem:[#allocation4 + $0x64] sm:$0xf]
    %v317 = vld [vmem:[#allocation4 + $0x68] sm:$0xf]
    %v318 = vld [vmem:[#allocation4 + $0x6c] sm:$0xf]
    %v319 = vld [vmem:[#allocation4 + $0x70] sm:$0xf]
    %v320 = vld [vmem:[#allocation4 + $0x74] sm:$0xf]
    %v321 = vld [vmem:[#allocation4 + $0x78] sm:$0xf]
    %v322 = vld [vmem:[#allocation4 + $0x7c] sm:$0xf]
    %v355 = vunpack.c.l.b16 %v291
    %v356 = vunpack.c.l.b16 %v292
    %v357 = vunpack.c.l.b16 %v293
    %v358 = vunpack.c.l.b16 %v294
    %v359 = vunpack.c.l.b16 %v295
    %v360 = vunpack.c.l.b16 %v296
    %v361 = vunpack.c.l.b16 %v297
    %v362 = vunpack.c.l.b16 %v298
    %v363 = vunpack.c.l.b16 %v299
    %v364 = vunpack.c.l.b16 %v300
    %v365 = vunpack.c.l.b16 %v301
    %v366 = vunpack.c.l.b16 %v302
    %v367 = vunpack.c.l.b16 %v303
    %v368 = vunpack.c.l.b16 %v304
    %v369 = vunpack.c.l.b16 %v305
    %v370 = vunpack.c.l.b16 %v306
    %v371 = vunpack.c.l.b16 %v307
    %v372 = vunpack.c.l.b16 %v308
    %v373 = vunpack.c.l.b16 %v309
    %v374 = vunpack.c.l.b16 %v310
    %v375 = vunpack.c.l.b16 %v311
    %v376 = vunpack.c.l.b16 %v312
    %v377 = vunpack.c.l.b16 %v313
    %v378 = vunpack.c.l.b16 %v314
    %v379 = vunpack.c.l.b16 %v315
    %v380 = vunpack.c.l.b16 %v316
    %v381 = vunpack.c.l.b16 %v317
    %v382 = vunpack.c.l.b16 %v318
    %v383 = vunpack.c.l.b16 %v319
    %v384 = vunpack.c.l.b16 %v320
    %v385 = vunpack.c.l.b16 %v321
    %v386 = vunpack.c.l.b16 %v322
    %v387 = vpack.c.b16 %v356, %v355
    %v388 = vpack.c.b16 %v358, %v357
    %v389 = vpack.c.b16 %v360, %v359
    %v390 = vpack.c.b16 %v362, %v361
    %v391 = vpack.c.b16 %v364, %v363
    %v392 = vpack.c.b16 %v366, %v365
    %v393 = vpack.c.b16 %v368, %v367
    %v394 = vpack.c.b16 %v370, %v369
    %v395 = vpack.c.b16 %v372, %v371
    %v396 = vpack.c.b16 %v374, %v373
    %v397 = vpack.c.b16 %v376, %v375
    %v398 = vpack.c.b16 %v378, %v377
    %v399 = vpack.c.b16 %v380, %v379
    %v400 = vpack.c.b16 %v382, %v381
    %v401 = vpack.c.b16 %v384, %v383
    %v402 = vpack.c.b16 %v386, %v385
    %419 = vmatpush.bf16.msra.mxu0 %v394
    %420 = vmatpush.bf16.msra.mxu0 %v393
    %421 = vmatpush.bf16.msra.mxu0 %v392
    %422 = vmatpush.bf16.msra.mxu0 %v391
    %423 = vmatpush.bf16.msra.mxu0 %v390
    %424 = vmatpush.bf16.msra.mxu0 %v389
    %425 = vmatpush.bf16.msra.mxu0 %v388
    %426 = vmatpush.bf16.msra.mxu0 %v387
    %427 = vmatmul.bf16.gmra.mxu0 %v289
    %v428 = vpop.f32.mrf.mxu0
    %v429 = vadd.f32 %v208, %v428
    %v430 = vpop.f32.mrf.mxu0
    %431 = vdwg.mxu0
    %432 = vmatpush.bf16.msra.mxu0 %v402
    %433 = vmatpush.bf16.msra.mxu0 %v401
    %434 = vmatpush.bf16.msra.mxu0 %v400
    %435 = vmatpush.bf16.msra.mxu0 %v399
    %436 = vmatpush.bf16.msra.mxu0 %v398
    %437 = vmatpush.bf16.msra.mxu0 %v397
    %438 = vmatpush.bf16.msra.mxu0 %v396
    %439 = vmatpush.bf16.msra.mxu0 %v395
    %440 = vmatmul.bf16.gmra.mxu0 %v290
    %v441 = vpop.f32.mrf.mxu0
    %v442 = vadd.f32 %v429, %v441
    %v443 = vpop.f32.mrf.mxu0
    %444 = vdwg.mxu0
    %v445 = vtanh.pop %v442
    %v446 = vpack.c.bf16 %v445, %v445
    %v447 = vld [vmem:[#allocation6] sm:$0xf]
    %v448 = vld [vmem:[#allocation6 + $0x4] sm:$0xf]
    %v449 = vld [vmem:[#allocation6 + $0x8] sm:$0xf]
    %v450 = vld [vmem:[#allocation6 + $0xc] sm:$0xf]
    %v451 = vld [vmem:[#allocation6 + $0x10] sm:$0xf]
    %v452 = vld [vmem:[#allocation6 + $0x14] sm:$0xf]
    %v453 = vld [vmem:[#allocation6 + $0x18] sm:$0xf]
    %v454 = vld [vmem:[#allocation6 + $0x1c] sm:$0xf]
    %v455 = vld [vmem:[#allocation6 + $0x20] sm:$0xf]
    %v456 = vld [vmem:[#allocation6 + $0x24] sm:$0xf]
    %v457 = vld [vmem:[#allocation6 + $0x28] sm:$0xf]
    %v458 = vld [vmem:[#allocation6 + $0x2c] sm:$0xf]
    %v459 = vld [vmem:[#allocation6 + $0x30] sm:$0xf]
    %v460 = vld [vmem:[#allocation6 + $0x34] sm:$0xf]
    %v461 = vld [vmem:[#allocation6 + $0x38] sm:$0xf]
    %v462 = vld [vmem:[#allocation6 + $0x3c] sm:$0xf]
    %463 = vmatpush.bf16.msra.mxu0 %v265
    %464 = vmatpush.bf16.msra.mxu0 %v264
    %465 = vmatpush.bf16.msra.mxu0 %v263
    %466 = vmatpush.bf16.msra.mxu0 %v262
    %467 = vmatpush.bf16.msra.mxu0 %v261
    %468 = vmatpush.bf16.msra.mxu0 %v260
    %469 = vmatpush.bf16.msra.mxu0 %v259
    %470 = vmatpush.bf16.msra.mxu0 %v258
    %471 = vmatmul.bf16.gmra.mxu0 %v289
    %v472 = vpop.f32.mrf.mxu0
    %v473 = vadd.f32 0.0, %v472
    %v474 = vpop.f32.mrf.mxu0
    %475 = vdwg.mxu0
    %v476 = vadd.f32 %v189, %v473
    %v477 = vtanh.pop %v476
    %v478 = vpack.c.bf16 %v477, %v477
    %479 = vmatpush.bf16.msra.mxu0 %v394
    %480 = vmatpush.bf16.msra.mxu0 %v393
    %481 = vmatpush.bf16.msra.mxu0 %v392
    %482 = vmatpush.bf16.msra.mxu0 %v391
    %483 = vmatpush.bf16.msra.mxu0 %v390
    %484 = vmatpush.bf16.msra.mxu0 %v389
    %485 = vmatpush.bf16.msra.mxu0 %v388
    %486 = vmatpush.bf16.msra.mxu0 %v387
    %487 = vmatmul.bf16.gmra.mxu0 %v478
    %v488 = vpop.f32.mrf.mxu0
    %v489 = vadd.f32 %v208, %v488
    %v490 = vpop.f32.mrf.mxu0
    %491 = vdwg.mxu0
    %492 = vmatpush.bf16.msra.mxu0 %v402
    %493 = vmatpush.bf16.msra.mxu0 %v401
    %494 = vmatpush.bf16.msra.mxu0 %v400
    %495 = vmatpush.bf16.msra.mxu0 %v399
    %496 = vmatpush.bf16.msra.mxu0 %v398
    %497 = vmatpush.bf16.msra.mxu0 %v397
    %498 = vmatpush.bf16.msra.mxu0 %v396
    %499 = vmatpush.bf16.msra.mxu0 %v395
    %500 = vmatmul.bf16.gmra.mxu0 %v446
    %v501 = vpop.f32.mrf.mxu0
    %v502 = vadd.f32 %v489, %v501
    %v503 = vpop.f32.mrf.mxu0
    %504 = vdwg.mxu0
    %v505 = vtanh.pop %v502
    %v506 = vpack.c.bf16 %v505, %v505
    %v507 = vld [vmem:[#allocation6 + $0x40] sm:$0xf]
    %v508 = vld [vmem:[#allocation6 + $0x44] sm:$0xf]
    %v509 = vld [vmem:[#allocation6 + $0x48] sm:$0xf]
    %v510 = vld [vmem:[#allocation6 + $0x4c] sm:$0xf]
    %v511 = vld [vmem:[#allocation6 + $0x50] sm:$0xf]
    %v512 = vld [vmem:[#allocation6 + $0x54] sm:$0xf]
    %v513 = vld [vmem:[#allocation6 + $0x58] sm:$0xf]
    %v514 = vld [vmem:[#allocation6 + $0x5c] sm:$0xf]
    %v515 = vld [vmem:[#allocation6 + $0x60] sm:$0xf]
    %v516 = vld [vmem:[#allocation6 + $0x64] sm:$0xf]
    %v517 = vld [vmem:[#allocation6 + $0x68] sm:$0xf]
    %v518 = vld [vmem:[#allocation6 + $0x6c] sm:$0xf]
    %v519 = vld [vmem:[#allocation6 + $0x70] sm:$0xf]
    %v520 = vld [vmem:[#allocation6 + $0x74] sm:$0xf]
    %v521 = vld [vmem:[#allocation6 + $0x78] sm:$0xf]
    %v522 = vld [vmem:[#allocation6 + $0x7c] sm:$0xf]
    %v539 = vunpack.c.l.b16 %v507
    %v540 = vunpack.c.l.b16 %v508
    %v541 = vunpack.c.l.b16 %v509
    %v542 = vunpack.c.l.b16 %v510
    %v543 = vunpack.c.l.b16 %v511
    %v544 = vunpack.c.l.b16 %v512
    %v545 = vunpack.c.l.b16 %v513
    %v546 = vunpack.c.l.b16 %v514
    %v547 = vunpack.c.l.b16 %v515
    %v548 = vunpack.c.l.b16 %v516
    %v549 = vunpack.c.l.b16 %v517
    %v550 = vunpack.c.l.b16 %v518
    %v551 = vunpack.c.l.b16 %v519
    %v552 = vunpack.c.l.b16 %v520
    %v553 = vunpack.c.l.b16 %v521
    %v554 = vunpack.c.l.b16 %v522
    %v555 = vpack.c.b16 %v540, %v539
    %v556 = vpack.c.b16 %v542, %v541
    %v557 = vpack.c.b16 %v544, %v543
    %v558 = vpack.c.b16 %v546, %v545
    %v559 = vpack.c.b16 %v548, %v547
    %v560 = vpack.c.b16 %v550, %v549
    %v561 = vpack.c.b16 %v552, %v551
    %v562 = vpack.c.b16 %v554, %v553
    %571 = vmatpush.bf16.msra.mxu0 %v562
    %572 = vmatpush.bf16.msra.mxu0 %v561
    %573 = vmatpush.bf16.msra.mxu0 %v560
    %574 = vmatpush.bf16.msra.mxu0 %v559
    %575 = vmatpush.bf16.msra.mxu0 %v558
    %576 = vmatpush.bf16.msra.mxu0 %v557
    %577 = vmatpush.bf16.msra.mxu0 %v556
    %578 = vmatpush.bf16.msra.mxu0 %v555
    %579 = vmatmul.bf16.gmra.mxu0 %v506
    %v580 = vpop.f32.mrf.mxu0
    %v581 = vadd.f32 0.0, %v580
    %v582 = vpop.f32.mrf.mxu0
    %583 = vdwg.mxu0
    %v600 = vunpack.c.l.b16 %v447
    %v601 = vunpack.c.l.b16 %v448
    %v602 = vunpack.c.l.b16 %v449
    %v603 = vunpack.c.l.b16 %v450
    %v604 = vunpack.c.l.b16 %v451
    %v605 = vunpack.c.l.b16 %v452
    %v606 = vunpack.c.l.b16 %v453
    %v607 = vunpack.c.l.b16 %v454
    %v608 = vunpack.c.l.b16 %v455
    %v609 = vunpack.c.l.b16 %v456
    %v610 = vunpack.c.l.b16 %v457
    %v611 = vunpack.c.l.b16 %v458
    %v612 = vunpack.c.l.b16 %v459
    %v613 = vunpack.c.l.b16 %v460
    %v614 = vunpack.c.l.b16 %v461
    %v615 = vunpack.c.l.b16 %v462
    %v616 = vpack.c.b16 %v601, %v600
    %v617 = vpack.c.b16 %v603, %v602
    %v618 = vpack.c.b16 %v605, %v604
    %v619 = vpack.c.b16 %v607, %v606
    %v620 = vpack.c.b16 %v609, %v608
    %v621 = vpack.c.b16 %v611, %v610
    %v622 = vpack.c.b16 %v613, %v612
    %v623 = vpack.c.b16 %v615, %v614
    %632 = vmatpush.bf16.msra.mxu0 %v623
    %633 = vmatpush.bf16.msra.mxu0 %v622
    %634 = vmatpush.bf16.msra.mxu0 %v621
    %635 = vmatpush.bf16.msra.mxu0 %v620
    %636 = vmatpush.bf16.msra.mxu0 %v619
    %637 = vmatpush.bf16.msra.mxu0 %v618
    %638 = vmatpush.bf16.msra.mxu0 %v617
    %639 = vmatpush.bf16.msra.mxu0 %v616
    %640 = vmatmul.bf16.gmra.mxu0 %v446
    %v641 = vpop.f32.mrf.mxu0
    %v642 = vadd.f32 %v581, %v641
    %v643 = vpop.f32.mrf.mxu0
    %644 = vdwg.mxu0
    %645 = vmatpush.bf16.msra.mxu0 %v265
    %646 = vmatpush.bf16.msra.mxu0 %v264
    %647 = vmatpush.bf16.msra.mxu0 %v263
    %648 = vmatpush.bf16.msra.mxu0 %v262
    %649 = vmatpush.bf16.msra.mxu0 %v261
    %650 = vmatpush.bf16.msra.mxu0 %v260
    %651 = vmatpush.bf16.msra.mxu0 %v259
    %652 = vmatpush.bf16.msra.mxu0 %v258
    %653 = vmatmul.bf16.gmra.mxu0 %v478
    %v654 = vpop.f32.mrf.mxu0
    %v655 = vadd.f32 0.0, %v654
    %v656 = vpop.f32.mrf.mxu0
    %657 = vdwg.mxu0
    %v658 = vadd.f32 %v192, %v655
    %v659 = vtanh.pop %v658
    %v660 = vpack.c.bf16 %v659, %v659
    %661 = vmatpush.bf16.msra.mxu0 %v394
    %662 = vmatpush.bf16.msra.mxu0 %v393
    %663 = vmatpush.bf16.msra.mxu0 %v392
    %664 = vmatpush.bf16.msra.mxu0 %v391
    %665 = vmatpush.bf16.msra.mxu0 %v390
    %666 = vmatpush.bf16.msra.mxu0 %v389
    %667 = vmatpush.bf16.msra.mxu0 %v388
    %668 = vmatpush.bf16.msra.mxu0 %v387
    %669 = vmatmul.bf16.gmra.mxu0 %v660
    %v670 = vpop.f32.mrf.mxu0
    %v671 = vadd.f32 %v208, %v670
    %v672 = vpop.f32.mrf.mxu0
    %673 = vdwg.mxu0
    %674 = vmatpush.bf16.msra.mxu0 %v402
    %675 = vmatpush.bf16.msra.mxu0 %v401
    %676 = vmatpush.bf16.msra.mxu0 %v400
    %677 = vmatpush.bf16.msra.mxu0 %v399
    %678 = vmatpush.bf16.msra.mxu0 %v398
    %679 = vmatpush.bf16.msra.mxu0 %v397
    %680 = vmatpush.bf16.msra.mxu0 %v396
    %681 = vmatpush.bf16.msra.mxu0 %v395
    %682 = vmatmul.bf16.gmra.mxu0 %v506
    %v683 = vpop.f32.mrf.mxu0
    %v684 = vadd.f32 %v671, %v683
    %v685 = vpop.f32.mrf.mxu0
    %686 = vdwg.mxu0
    %v687 = vtanh.pop %v684
    %v688 = vpack.c.bf16 %v687, %v687
    %v689 = vld [vmem:[#allocation6 + $0x80] sm:$0xf]
    %v690 = vld [vmem:[#allocation6 + $0x84] sm:$0xf]
    %v691 = vld [vmem:[#allocation6 + $0x88] sm:$0xf]
    %v692 = vld [vmem:[#allocation6 + $0x8c] sm:$0xf]
    %v693 = vld [vmem:[#allocation6 + $0x90] sm:$0xf]
    %v694 = vld [vmem:[#allocation6 + $0x94] sm:$0xf]
    %v695 = vld [vmem:[#allocation6 + $0x98] sm:$0xf]
    %v696 = vld [vmem:[#allocation6 + $0x9c] sm:$0xf]
    %v697 = vld [vmem:[#allocation6 + $0xa0] sm:$0xf]
    %v698 = vld [vmem:[#allocation6 + $0xa4] sm:$0xf]
    %v699 = vld [vmem:[#allocation6 + $0xa8] sm:$0xf]
    %v700 = vld [vmem:[#allocation6 + $0xac] sm:$0xf]
    %v701 = vld [vmem:[#allocation6 + $0xb0] sm:$0xf]
    %v702 = vld [vmem:[#allocation6 + $0xb4] sm:$0xf]
    %v703 = vld [vmem:[#allocation6 + $0xb8] sm:$0xf]
    %v704 = vld [vmem:[#allocation6 + $0xbc] sm:$0xf]
    %v721 = vunpack.c.l.b16 %v689
    %v722 = vunpack.c.l.b16 %v690
    %v723 = vunpack.c.l.b16 %v691
    %v724 = vunpack.c.l.b16 %v692
    %v725 = vunpack.c.l.b16 %v693
    %v726 = vunpack.c.l.b16 %v694
    %v727 = vunpack.c.l.b16 %v695
    %v728 = vunpack.c.l.b16 %v696
    %v729 = vunpack.c.l.b16 %v697
    %v730 = vunpack.c.l.b16 %v698
    %v731 = vunpack.c.l.b16 %v699
    %v732 = vunpack.c.l.b16 %v700
    %v733 = vunpack.c.l.b16 %v701
    %v734 = vunpack.c.l.b16 %v702
    %v735 = vunpack.c.l.b16 %v703
    %v736 = vunpack.c.l.b16 %v704
    %v737 = vpack.c.b16 %v722, %v721
    %v738 = vpack.c.b16 %v724, %v723
    %v739 = vpack.c.b16 %v726, %v725
    %v740 = vpack.c.b16 %v728, %v727
    %v741 = vpack.c.b16 %v730, %v729
    %v742 = vpack.c.b16 %v732, %v731
    %v743 = vpack.c.b16 %v734, %v733
    %v744 = vpack.c.b16 %v736, %v735
    %753 = vmatpush.bf16.msra.mxu0 %v744
    %754 = vmatpush.bf16.msra.mxu0 %v743
    %755 = vmatpush.bf16.msra.mxu0 %v742
    %756 = vmatpush.bf16.msra.mxu0 %v741
    %757 = vmatpush.bf16.msra.mxu0 %v740
    %758 = vmatpush.bf16.msra.mxu0 %v739
    %759 = vmatpush.bf16.msra.mxu0 %v738
    %760 = vmatpush.bf16.msra.mxu0 %v737
    %761 = vmatmul.bf16.gmra.mxu0 %v688
    %v762 = vpop.f32.mrf.mxu0
    %v763 = vadd.f32 0.0, %v762
    %v764 = vpop.f32.mrf.mxu0
    %765 = vdwg.mxu0
    %v766 = vadd.f32 %v642, %v763
    %767 = vmatpush.bf16.msra.mxu0 %v265
    %768 = vmatpush.bf16.msra.mxu0 %v264
    %769 = vmatpush.bf16.msra.mxu0 %v263
    %770 = vmatpush.bf16.msra.mxu0 %v262
    %771 = vmatpush.bf16.msra.mxu0 %v261
    %772 = vmatpush.bf16.msra.mxu0 %v260
    %773 = vmatpush.bf16.msra.mxu0 %v259
    %774 = vmatpush.bf16.msra.mxu0 %v258
    %775 = vmatmul.bf16.gmra.mxu0 %v660
    %v776 = vpop.f32.mrf.mxu0
    %v777 = vadd.f32 0.0, %v776
    %v778 = vpop.f32.mrf.mxu0
    %779 = vdwg.mxu0
    %v780 = vadd.f32 %v194, %v777
    %v781 = vtanh.pop %v780
    %v782 = vpack.c.bf16 %v781, %v781
    %783 = vmatpush.bf16.msra.mxu0 %v394
    %784 = vmatpush.bf16.msra.mxu0 %v393
    %785 = vmatpush.bf16.msra.mxu0 %v392
    %786 = vmatpush.bf16.msra.mxu0 %v391
    %787 = vmatpush.bf16.msra.mxu0 %v390
    %788 = vmatpush.bf16.msra.mxu0 %v389
    %789 = vmatpush.bf16.msra.mxu0 %v388
    %790 = vmatpush.bf16.msra.mxu0 %v387
    %791 = vmatmul.bf16.gmra.mxu0 %v782
    %v792 = vpop.f32.mrf.mxu0
    %v793 = vadd.f32 %v208, %v792
    %v794 = vpop.f32.mrf.mxu0
    %795 = vdwg.mxu0
    %796 = vmatpush.bf16.msra.mxu0 %v402
    %797 = vmatpush.bf16.msra.mxu0 %v401
    %798 = vmatpush.bf16.msra.mxu0 %v400
    %799 = vmatpush.bf16.msra.mxu0 %v399
    %800 = vmatpush.bf16.msra.mxu0 %v398
    %801 = vmatpush.bf16.msra.mxu0 %v397
    %802 = vmatpush.bf16.msra.mxu0 %v396
    %803 = vmatpush.bf16.msra.mxu0 %v395
    %804 = vmatmul.bf16.gmra.mxu0 %v688
    %v805 = vpop.f32.mrf.mxu0
    %v806 = vadd.f32 %v793, %v805
    %v807 = vpop.f32.mrf.mxu0
    %808 = vdwg.mxu0
    %v809 = vtanh.pop %v806
    %v810 = vpack.c.bf16 %v809, %v809
    %v811 = vld [vmem:[#allocation6 + $0xc0] sm:$0xf]
    %v812 = vld [vmem:[#allocation6 + $0xc4] sm:$0xf]
    %v813 = vld [vmem:[#allocation6 + $0xc8] sm:$0xf]
    %v814 = vld [vmem:[#allocation6 + $0xcc] sm:$0xf]
    %v815 = vld [vmem:[#allocation6 + $0xd0] sm:$0xf]
    %v816 = vld [vmem:[#allocation6 + $0xd4] sm:$0xf]
    %v817 = vld [vmem:[#allocation6 + $0xd8] sm:$0xf]
    %v818 = vld [vmem:[#allocation6 + $0xdc] sm:$0xf]
    %v819 = vld [vmem:[#allocation6 + $0xe0] sm:$0xf]
    %v820 = vld [vmem:[#allocation6 + $0xe4] sm:$0xf]
    %v821 = vld [vmem:[#allocation6 + $0xe8] sm:$0xf]
    %v822 = vld [vmem:[#allocation6 + $0xec] sm:$0xf]
    %v823 = vld [vmem:[#allocation6 + $0xf0] sm:$0xf]
    %v824 = vld [vmem:[#allocation6 + $0xf4] sm:$0xf]
    %v825 = vld [vmem:[#allocation6 + $0xf8] sm:$0xf]
    %v826 = vld [vmem:[#allocation6 + $0xfc] sm:$0xf]
    %v843 = vunpack.c.l.b16 %v811
    %v844 = vunpack.c.l.b16 %v812
    %v845 = vunpack.c.l.b16 %v813
    %v846 = vunpack.c.l.b16 %v814
    %v847 = vunpack.c.l.b16 %v815
    %v848 = vunpack.c.l.b16 %v816
    %v849 = vunpack.c.l.b16 %v817
    %v850 = vunpack.c.l.b16 %v818
    %v851 = vunpack.c.l.b16 %v819
    %v852 = vunpack.c.l.b16 %v820
    %v853 = vunpack.c.l.b16 %v821
    %v854 = vunpack.c.l.b16 %v822
    %v855 = vunpack.c.l.b16 %v823
    %v856 = vunpack.c.l.b16 %v824
    %v857 = vunpack.c.l.b16 %v825
    %v858 = vunpack.c.l.b16 %v826
    %v859 = vpack.c.b16 %v844, %v843
    %v860 = vpack.c.b16 %v846, %v845
    %v861 = vpack.c.b16 %v848, %v847
    %v862 = vpack.c.b16 %v850, %v849
    %v863 = vpack.c.b16 %v852, %v851
    %v864 = vpack.c.b16 %v854, %v853
    %v865 = vpack.c.b16 %v856, %v855
    %v866 = vpack.c.b16 %v858, %v857
    %875 = vmatpush.bf16.msra.mxu0 %v866
    %876 = vmatpush.bf16.msra.mxu0 %v865
    %877 = vmatpush.bf16.msra.mxu0 %v864
    %878 = vmatpush.bf16.msra.mxu0 %v863
    %879 = vmatpush.bf16.msra.mxu0 %v862
    %880 = vmatpush.bf16.msra.mxu0 %v861
    %881 = vmatpush.bf16.msra.mxu0 %v860
    %882 = vmatpush.bf16.msra.mxu0 %v859
    %883 = vmatmul.bf16.gmra.mxu0 %v810
    %v884 = vpop.f32.mrf.mxu0
    %v885 = vadd.f32 0.0, %v884
    %v886 = vpop.f32.mrf.mxu0
    %887 = vdwg.mxu0
    %v888 = vadd.f32 %v766, %v885
    %889 = vmatpush.bf16.msra.mxu0 %v265
    %890 = vmatpush.bf16.msra.mxu0 %v264
    %891 = vmatpush.bf16.msra.mxu0 %v263
    %892 = vmatpush.bf16.msra.mxu0 %v262
    %893 = vmatpush.bf16.msra.mxu0 %v261
    %894 = vmatpush.bf16.msra.mxu0 %v260
    %895 = vmatpush.bf16.msra.mxu0 %v259
    %896 = vmatpush.bf16.msra.mxu0 %v258
    %897 = vmatmul.bf16.gmra.mxu0 %v782
    %v898 = vpop.f32.mrf.mxu0
    %v899 = vadd.f32 0.0, %v898
    %v900 = vpop.f32.mrf.mxu0
    %901 = vdwg.mxu0
    %v902 = vadd.f32 %v197, %v899
    %v903 = vtanh.pop %v902
    %v904 = vpack.c.bf16 %v903, %v903
    %905 = vmatpush.bf16.msra.mxu0 %v394
    %906 = vmatpush.bf16.msra.mxu0 %v393
    %907 = vmatpush.bf16.msra.mxu0 %v392
    %908 = vmatpush.bf16.msra.mxu0 %v391
    %909 = vmatpush.bf16.msra.mxu0 %v390
    %910 = vmatpush.bf16.msra.mxu0 %v389
    %911 = vmatpush.bf16.msra.mxu0 %v388
    %912 = vmatpush.bf16.msra.mxu0 %v387
    %913 = vmatmul.bf16.gmra.mxu0 %v904
    %v914 = vpop.f32.mrf.mxu0
    %v915 = vadd.f32 %v208, %v914
    %v916 = vpop.f32.mrf.mxu0
    %917 = vdwg.mxu0
    %918 = vmatpush.bf16.msra.mxu0 %v402
    %919 = vmatpush.bf16.msra.mxu0 %v401
    %920 = vmatpush.bf16.msra.mxu0 %v400
    %921 = vmatpush.bf16.msra.mxu0 %v399
    %922 = vmatpush.bf16.msra.mxu0 %v398
    %923 = vmatpush.bf16.msra.mxu0 %v397
    %924 = vmatpush.bf16.msra.mxu0 %v396
    %925 = vmatpush.bf16.msra.mxu0 %v395
    %926 = vmatmul.bf16.gmra.mxu0 %v810
    %v927 = vpop.f32.mrf.mxu0
    %v928 = vadd.f32 %v915, %v927
    %v929 = vpop.f32.mrf.mxu0
    %930 = vdwg.mxu0
    %v931 = vtanh.pop %v928
    %v932 = vpack.c.bf16 %v931, %v931
    %v933 = vld [vmem:[#allocation6 + $0x100] sm:$0xf]
    %v934 = vld [vmem:[#allocation6 + $0x104] sm:$0xf]
    %v935 = vld [vmem:[#allocation6 + $0x108] sm:$0xf]
    %v936 = vld [vmem:[#allocation6 + $0x10c] sm:$0xf]
    %v937 = vld [vmem:[#allocation6 + $0x110] sm:$0xf]
    %v938 = vld [vmem:[#allocation6 + $0x114] sm:$0xf]
    %v939 = vld [vmem:[#allocation6 + $0x118] sm:$0xf]
    %v940 = vld [vmem:[#allocation6 + $0x11c] sm:$0xf]
    %v941 = vld [vmem:[#allocation6 + $0x120] sm:$0xf]
    %v942 = vld [vmem:[#allocation6 + $0x124] sm:$0xf]
    %v943 = vld [vmem:[#allocation6 + $0x128] sm:$0xf]
    %v944 = vld [vmem:[#allocation6 + $0x12c] sm:$0xf]
    %v945 = vld [vmem:[#allocation6 + $0x130] sm:$0xf]
    %v946 = vld [vmem:[#allocation6 + $0x134] sm:$0xf]
    %v947 = vld [vmem:[#allocation6 + $0x138] sm:$0xf]
    %v948 = vld [vmem:[#allocation6 + $0x13c] sm:$0xf]
    %v965 = vunpack.c.l.b16 %v933
    %v966 = vunpack.c.l.b16 %v934
    %v967 = vunpack.c.l.b16 %v935
    %v968 = vunpack.c.l.b16 %v936
    %v969 = vunpack.c.l.b16 %v937
    %v970 = vunpack.c.l.b16 %v938
    %v971 = vunpack.c.l.b16 %v939
    %v972 = vunpack.c.l.b16 %v940
    %v973 = vunpack.c.l.b16 %v941
    %v974 = vunpack.c.l.b16 %v942
    %v975 = vunpack.c.l.b16 %v943
    %v976 = vunpack.c.l.b16 %v944
    %v977 = vunpack.c.l.b16 %v945
    %v978 = vunpack.c.l.b16 %v946
    %v979 = vunpack.c.l.b16 %v947
    %v980 = vunpack.c.l.b16 %v948
    %v981 = vpack.c.b16 %v966, %v965
    %v982 = vpack.c.b16 %v968, %v967
    %v983 = vpack.c.b16 %v970, %v969
    %v984 = vpack.c.b16 %v972, %v971
    %v985 = vpack.c.b16 %v974, %v973
    %v986 = vpack.c.b16 %v976, %v975
    %v987 = vpack.c.b16 %v978, %v977
    %v988 = vpack.c.b16 %v980, %v979
    %997 = vmatpush.bf16.msra.mxu0 %v988
    %998 = vmatpush.bf16.msra.mxu0 %v987
    %999 = vmatpush.bf16.msra.mxu0 %v986
    %1000 = vmatpush.bf16.msra.mxu0 %v985
    %1001 = vmatpush.bf16.msra.mxu0 %v984
    %1002 = vmatpush.bf16.msra.mxu0 %v983
    %1003 = vmatpush.bf16.msra.mxu0 %v982
    %1004 = vmatpush.bf16.msra.mxu0 %v981
    %1005 = vmatmul.bf16.gmra.mxu0 %v932
    %v1006 = vpop.f32.mrf.mxu0
    %v1007 = vadd.f32 0.0, %v1006
    %v1008 = vpop.f32.mrf.mxu0
    %1009 = vdwg.mxu0
    %v1010 = vadd.f32 %v888, %v1007
    %1011 = vmatpush.bf16.msra.mxu0 %v265
    %1012 = vmatpush.bf16.msra.mxu0 %v264
    %1013 = vmatpush.bf16.msra.mxu0 %v263
    %1014 = vmatpush.bf16.msra.mxu0 %v262
    %1015 = vmatpush.bf16.msra.mxu0 %v261
    %1016 = vmatpush.bf16.msra.mxu0 %v260
    %1017 = vmatpush.bf16.msra.mxu0 %v259
    %1018 = vmatpush.bf16.msra.mxu0 %v258
    %1019 = vmatmul.bf16.gmra.mxu0 %v904
    %v1020 = vpop.f32.mrf.mxu0
    %v1021 = vadd.f32 0.0, %v1020
    %v1022 = vpop.f32.mrf.mxu0
    %1023 = vdwg.mxu0
    %v1024 = vadd.f32 %v199, %v1021
    %v1025 = vtanh.pop %v1024
    %v1026 = vpack.c.bf16 %v1025, %v1025
    %1027 = vmatpush.bf16.msra.mxu0 %v394
    %1028 = vmatpush.bf16.msra.mxu0 %v393
    %1029 = vmatpush.bf16.msra.mxu0 %v392
    %1030 = vmatpush.bf16.msra.mxu0 %v391
    %1031 = vmatpush.bf16.msra.mxu0 %v390
    %1032 = vmatpush.bf16.msra.mxu0 %v389
    %1033 = vmatpush.bf16.msra.mxu0 %v388
    %1034 = vmatpush.bf16.msra.mxu0 %v387
    %1035 = vmatmul.bf16.gmra.mxu0 %v1026
    %v1036 = vpop.f32.mrf.mxu0
    %v1037 = vadd.f32 %v208, %v1036
    %v1038 = vpop.f32.mrf.mxu0
    %1039 = vdwg.mxu0
    %1040 = vmatpush.bf16.msra.mxu0 %v402
    %1041 = vmatpush.bf16.msra.mxu0 %v401
    %1042 = vmatpush.bf16.msra.mxu0 %v400
    %1043 = vmatpush.bf16.msra.mxu0 %v399
    %1044 = vmatpush.bf16.msra.mxu0 %v398
    %1045 = vmatpush.bf16.msra.mxu0 %v397
    %1046 = vmatpush.bf16.msra.mxu0 %v396
    %1047 = vmatpush.bf16.msra.mxu0 %v395
    %1048 = vmatmul.bf16.gmra.mxu0 %v932
    %v1049 = vpop.f32.mrf.mxu0
    %v1050 = vadd.f32 %v1037, %v1049
    %v1051 = vpop.f32.mrf.mxu0
    %1052 = vdwg.mxu0
    %v1053 = vtanh.pop %v1050
    %v1054 = vpack.c.bf16 %v1053, %v1053
    %v1055 = vld [vmem:[#allocation6 + $0x140] sm:$0xf]
    %v1056 = vld [vmem:[#allocation6 + $0x144] sm:$0xf]
    %v1057 = vld [vmem:[#allocation6 + $0x148] sm:$0xf]
    %v1058 = vld [vmem:[#allocation6 + $0x14c] sm:$0xf]
    %v1059 = vld [vmem:[#allocation6 + $0x150] sm:$0xf]
    %v1060 = vld [vmem:[#allocation6 + $0x154] sm:$0xf]
    %v1061 = vld [vmem:[#allocation6 + $0x158] sm:$0xf]
    %v1062 = vld [vmem:[#allocation6 + $0x15c] sm:$0xf]
    %v1063 = vld [vmem:[#allocation6 + $0x160] sm:$0xf]
    %v1064 = vld [vmem:[#allocation6 + $0x164] sm:$0xf]
    %v1065 = vld [vmem:[#allocation6 + $0x168] sm:$0xf]
    %v1066 = vld [vmem:[#allocation6 + $0x16c] sm:$0xf]
    %v1067 = vld [vmem:[#allocation6 + $0x170] sm:$0xf]
    %v1068 = vld [vmem:[#allocation6 + $0x174] sm:$0xf]
    %v1069 = vld [vmem:[#allocation6 + $0x178] sm:$0xf]
    %v1070 = vld [vmem:[#allocation6 + $0x17c] sm:$0xf]
    %v1087 = vunpack.c.l.b16 %v1055
    %v1088 = vunpack.c.l.b16 %v1056
    %v1089 = vunpack.c.l.b16 %v1057
    %v1090 = vunpack.c.l.b16 %v1058
    %v1091 = vunpack.c.l.b16 %v1059
    %v1092 = vunpack.c.l.b16 %v1060
    %v1093 = vunpack.c.l.b16 %v1061
    %v1094 = vunpack.c.l.b16 %v1062
    %v1095 = vunpack.c.l.b16 %v1063
    %v1096 = vunpack.c.l.b16 %v1064
    %v1097 = vunpack.c.l.b16 %v1065
    %v1098 = vunpack.c.l.b16 %v1066
    %v1099 = vunpack.c.l.b16 %v1067
    %v1100 = vunpack.c.l.b16 %v1068
    %v1101 = vunpack.c.l.b16 %v1069
    %v1102 = vunpack.c.l.b16 %v1070
    %v1103 = vpack.c.b16 %v1088, %v1087
    %v1104 = vpack.c.b16 %v1090, %v1089
    %v1105 = vpack.c.b16 %v1092, %v1091
    %v1106 = vpack.c.b16 %v1094, %v1093
    %v1107 = vpack.c.b16 %v1096, %v1095
    %v1108 = vpack.c.b16 %v1098, %v1097
    %v1109 = vpack.c.b16 %v1100, %v1099
    %v1110 = vpack.c.b16 %v1102, %v1101
    %1119 = vmatpush.bf16.msra.mxu0 %v1110
    %1120 = vmatpush.bf16.msra.mxu0 %v1109
    %1121 = vmatpush.bf16.msra.mxu0 %v1108
    %1122 = vmatpush.bf16.msra.mxu0 %v1107
    %1123 = vmatpush.bf16.msra.mxu0 %v1106
    %1124 = vmatpush.bf16.msra.mxu0 %v1105
    %1125 = vmatpush.bf16.msra.mxu0 %v1104
    %1126 = vmatpush.bf16.msra.mxu0 %v1103
    %1127 = vmatmul.bf16.gmra.mxu0 %v1054
    %v1128 = vpop.f32.mrf.mxu0
    %v1129 = vadd.f32 0.0, %v1128
    %v1130 = vpop.f32.mrf.mxu0
    %1131 = vdwg.mxu0
    %v1132 = vadd.f32 %v1010, %v1129
    %1133 = vmatpush.bf16.msra.mxu0 %v265
    %1134 = vmatpush.bf16.msra.mxu0 %v264
    %1135 = vmatpush.bf16.msra.mxu0 %v263
    %1136 = vmatpush.bf16.msra.mxu0 %v262
    %1137 = vmatpush.bf16.msra.mxu0 %v261
    %1138 = vmatpush.bf16.msra.mxu0 %v260
    %1139 = vmatpush.bf16.msra.mxu0 %v259
    %1140 = vmatpush.bf16.msra.mxu0 %v258
    %1141 = vmatmul.bf16.gmra.mxu0 %v1026
    %v1142 = vpop.f32.mrf.mxu0
    %v1143 = vadd.f32 0.0, %v1142
    %v1144 = vpop.f32.mrf.mxu0
    %1145 = vdwg.mxu0
    %v1146 = vadd.f32 %v202, %v1143
    %v1147 = vtanh.pop %v1146
    %v1148 = vpack.c.bf16 %v1147, %v1147
    %1149 = vmatpush.bf16.msra.mxu0 %v394
    %1150 = vmatpush.bf16.msra.mxu0 %v393
    %1151 = vmatpush.bf16.msra.mxu0 %v392
    %1152 = vmatpush.bf16.msra.mxu0 %v391
    %1153 = vmatpush.bf16.msra.mxu0 %v390
    %1154 = vmatpush.bf16.msra.mxu0 %v389
    %1155 = vmatpush.bf16.msra.mxu0 %v388
    %1156 = vmatpush.bf16.msra.mxu0 %v387
    %1157 = vmatmul.bf16.gmra.mxu0 %v1148
    %v1158 = vpop.f32.mrf.mxu0
    %v1159 = vadd.f32 %v208, %v1158
    %v1160 = vpop.f32.mrf.mxu0
    %1161 = vdwg.mxu0
    %1162 = vmatpush.bf16.msra.mxu0 %v402
    %1163 = vmatpush.bf16.msra.mxu0 %v401
    %1164 = vmatpush.bf16.msra.mxu0 %v400
    %1165 = vmatpush.bf16.msra.mxu0 %v399
    %1166 = vmatpush.bf16.msra.mxu0 %v398
    %1167 = vmatpush.bf16.msra.mxu0 %v397
    %1168 = vmatpush.bf16.msra.mxu0 %v396
    %1169 = vmatpush.bf16.msra.mxu0 %v395
    %1170 = vmatmul.bf16.gmra.mxu0 %v1054
    %v1171 = vpop.f32.mrf.mxu0
    %v1172 = vadd.f32 %v1159, %v1171
    %v1173 = vpop.f32.mrf.mxu0
    %1174 = vdwg.mxu0
    %v1175 = vtanh.pop %v1172
    %v1176 = vpack.c.bf16 %v1175, %v1175
    %v1177 = vld [vmem:[#allocation6 + $0x180] sm:$0xf]
    %v1178 = vld [vmem:[#allocation6 + $0x184] sm:$0xf]
    %v1179 = vld [vmem:[#allocation6 + $0x188] sm:$0xf]
    %v1180 = vld [vmem:[#allocation6 + $0x18c] sm:$0xf]
    %v1181 = vld [vmem:[#allocation6 + $0x190] sm:$0xf]
    %v1182 = vld [vmem:[#allocation6 + $0x194] sm:$0xf]
    %v1183 = vld [vmem:[#allocation6 + $0x198] sm:$0xf]
    %v1184 = vld [vmem:[#allocation6 + $0x19c] sm:$0xf]
    %v1185 = vld [vmem:[#allocation6 + $0x1a0] sm:$0xf]
    %v1186 = vld [vmem:[#allocation6 + $0x1a4] sm:$0xf]
    %v1187 = vld [vmem:[#allocation6 + $0x1a8] sm:$0xf]
    %v1188 = vld [vmem:[#allocation6 + $0x1ac] sm:$0xf]
    %v1189 = vld [vmem:[#allocation6 + $0x1b0] sm:$0xf]
    %v1190 = vld [vmem:[#allocation6 + $0x1b4] sm:$0xf]
    %v1191 = vld [vmem:[#allocation6 + $0x1b8] sm:$0xf]
    %v1192 = vld [vmem:[#allocation6 + $0x1bc] sm:$0xf]
    %v1209 = vunpack.c.l.b16 %v1177
    %v1210 = vunpack.c.l.b16 %v1178
    %v1211 = vunpack.c.l.b16 %v1179
    %v1212 = vunpack.c.l.b16 %v1180
    %v1213 = vunpack.c.l.b16 %v1181
    %v1214 = vunpack.c.l.b16 %v1182
    %v1215 = vunpack.c.l.b16 %v1183
    %v1216 = vunpack.c.l.b16 %v1184
    %v1217 = vunpack.c.l.b16 %v1185
    %v1218 = vunpack.c.l.b16 %v1186
    %v1219 = vunpack.c.l.b16 %v1187
    %v1220 = vunpack.c.l.b16 %v1188
    %v1221 = vunpack.c.l.b16 %v1189
    %v1222 = vunpack.c.l.b16 %v1190
    %v1223 = vunpack.c.l.b16 %v1191
    %v1224 = vunpack.c.l.b16 %v1192
    %v1225 = vpack.c.b16 %v1210, %v1209
    %v1226 = vpack.c.b16 %v1212, %v1211
    %v1227 = vpack.c.b16 %v1214, %v1213
    %v1228 = vpack.c.b16 %v1216, %v1215
    %v1229 = vpack.c.b16 %v1218, %v1217
    %v1230 = vpack.c.b16 %v1220, %v1219
    %v1231 = vpack.c.b16 %v1222, %v1221
    %v1232 = vpack.c.b16 %v1224, %v1223
    %1241 = vmatpush.bf16.msra.mxu0 %v1232
    %1242 = vmatpush.bf16.msra.mxu0 %v1231
    %1243 = vmatpush.bf16.msra.mxu0 %v1230
    %1244 = vmatpush.bf16.msra.mxu0 %v1229
    %1245 = vmatpush.bf16.msra.mxu0 %v1228
    %1246 = vmatpush.bf16.msra.mxu0 %v1227
    %1247 = vmatpush.bf16.msra.mxu0 %v1226
    %1248 = vmatpush.bf16.msra.mxu0 %v1225
    %1249 = vmatmul.bf16.gmra.mxu0 %v1176
    %v1250 = vpop.f32.mrf.mxu0
    %v1251 = vadd.f32 0.0, %v1250
    %v1252 = vpop.f32.mrf.mxu0
    %1253 = vdwg.mxu0
    %v1254 = vadd.f32 %v1132, %v1251
    %1255 = vmatpush.bf16.msra.mxu0 %v265
    %1256 = vmatpush.bf16.msra.mxu0 %v264
    %1257 = vmatpush.bf16.msra.mxu0 %v263
    %1258 = vmatpush.bf16.msra.mxu0 %v262
    %1259 = vmatpush.bf16.msra.mxu0 %v261
    %1260 = vmatpush.bf16.msra.mxu0 %v260
    %1261 = vmatpush.bf16.msra.mxu0 %v259
    %1262 = vmatpush.bf16.msra.mxu0 %v258
    %1263 = vmatmul.bf16.gmra.mxu0 %v1148
    %v1264 = vpop.f32.mrf.mxu0
    %v1265 = vadd.f32 0.0, %v1264
    %v1266 = vpop.f32.mrf.mxu0
    %1267 = vdwg.mxu0
    %v1268 = vadd.f32 %v204, %v1265
    %v1269 = vtanh.pop %v1268
    %v1270 = vpack.c.bf16 %v1269, %v1269
    %1271 = vmatpush.bf16.msra.mxu0 %v394
    %1272 = vmatpush.bf16.msra.mxu0 %v393
    %1273 = vmatpush.bf16.msra.mxu0 %v392
    %1274 = vmatpush.bf16.msra.mxu0 %v391
    %1275 = vmatpush.bf16.msra.mxu0 %v390
    %1276 = vmatpush.bf16.msra.mxu0 %v389
    %1277 = vmatpush.bf16.msra.mxu0 %v388
    %1278 = vmatpush.bf16.msra.mxu0 %v387
    %1279 = vmatmul.bf16.gmra.mxu0 %v1270
    %v1280 = vpop.f32.mrf.mxu0
    %v1281 = vadd.f32 %v208, %v1280
    %v1282 = vpop.f32.mrf.mxu0
    %1283 = vdwg.mxu0
    %1284 = vmatpush.bf16.msra.mxu0 %v402
    %1285 = vmatpush.bf16.msra.mxu0 %v401
    %1286 = vmatpush.bf16.msra.mxu0 %v400
    %1287 = vmatpush.bf16.msra.mxu0 %v399
    %1288 = vmatpush.bf16.msra.mxu0 %v398
    %1289 = vmatpush.bf16.msra.mxu0 %v397
    %1290 = vmatpush.bf16.msra.mxu0 %v396
    %1291 = vmatpush.bf16.msra.mxu0 %v395
    %1292 = vmatmul.bf16.gmra.mxu0 %v1176
    %v1293 = vpop.f32.mrf.mxu0
    %v1294 = vadd.f32 %v1281, %v1293
    %v1295 = vpop.f32.mrf.mxu0
    %1296 = vdwg.mxu0
    %v1297 = vtanh.pop %v1294
    %v1298 = vpack.c.bf16 %v1297, %v1297
    %v1299 = vld [vmem:[#allocation6 + $0x1c0] sm:$0xf]
    %v1300 = vld [vmem:[#allocation6 + $0x1c4] sm:$0xf]
    %v1301 = vld [vmem:[#allocation6 + $0x1c8] sm:$0xf]
    %v1302 = vld [vmem:[#allocation6 + $0x1cc] sm:$0xf]
    %v1303 = vld [vmem:[#allocation6 + $0x1d0] sm:$0xf]
    %v1304 = vld [vmem:[#allocation6 + $0x1d4] sm:$0xf]
    %v1305 = vld [vmem:[#allocation6 + $0x1d8] sm:$0xf]
    %v1306 = vld [vmem:[#allocation6 + $0x1dc] sm:$0xf]
    %v1307 = vld [vmem:[#allocation6 + $0x1e0] sm:$0xf]
    %v1308 = vld [vmem:[#allocation6 + $0x1e4] sm:$0xf]
    %v1309 = vld [vmem:[#allocation6 + $0x1e8] sm:$0xf]
    %v1310 = vld [vmem:[#allocation6 + $0x1ec] sm:$0xf]
    %v1311 = vld [vmem:[#allocation6 + $0x1f0] sm:$0xf]
    %v1312 = vld [vmem:[#allocation6 + $0x1f4] sm:$0xf]
    %v1313 = vld [vmem:[#allocation6 + $0x1f8] sm:$0xf]
    %v1314 = vld [vmem:[#allocation6 + $0x1fc] sm:$0xf]
    %v1331 = vunpack.c.l.b16 %v1299
    %v1332 = vunpack.c.l.b16 %v1300
    %v1333 = vunpack.c.l.b16 %v1301
    %v1334 = vunpack.c.l.b16 %v1302
    %v1335 = vunpack.c.l.b16 %v1303
    %v1336 = vunpack.c.l.b16 %v1304
    %v1337 = vunpack.c.l.b16 %v1305
    %v1338 = vunpack.c.l.b16 %v1306
    %v1339 = vunpack.c.l.b16 %v1307
    %v1340 = vunpack.c.l.b16 %v1308
    %v1341 = vunpack.c.l.b16 %v1309
    %v1342 = vunpack.c.l.b16 %v1310
    %v1343 = vunpack.c.l.b16 %v1311
    %v1344 = vunpack.c.l.b16 %v1312
    %v1345 = vunpack.c.l.b16 %v1313
    %v1346 = vunpack.c.l.b16 %v1314
    %v1347 = vpack.c.b16 %v1332, %v1331
    %v1348 = vpack.c.b16 %v1334, %v1333
    %v1349 = vpack.c.b16 %v1336, %v1335
    %v1350 = vpack.c.b16 %v1338, %v1337
    %v1351 = vpack.c.b16 %v1340, %v1339
    %v1352 = vpack.c.b16 %v1342, %v1341
    %v1353 = vpack.c.b16 %v1344, %v1343
    %v1354 = vpack.c.b16 %v1346, %v1345
    %1363 = vmatpush.bf16.msra.mxu0 %v1354
    %1364 = vmatpush.bf16.msra.mxu0 %v1353
    %1365 = vmatpush.bf16.msra.mxu0 %v1352
    %1366 = vmatpush.bf16.msra.mxu0 %v1351
    %1367 = vmatpush.bf16.msra.mxu0 %v1350
    %1368 = vmatpush.bf16.msra.mxu0 %v1349
    %1369 = vmatpush.bf16.msra.mxu0 %v1348
    %1370 = vmatpush.bf16.msra.mxu0 %v1347
    %1371 = vmatmul.bf16.gmra.mxu0 %v1298
    %v1372 = vpop.f32.mrf.mxu0
    %v1373 = vadd.f32 0.0, %v1372
    %v1374 = vpop.f32.mrf.mxu0
    %1375 = vdwg.mxu0
    %v1376 = vadd.f32 %v1254, %v1373
    %v1377 = vld [vmem:[%s7] sm:$0x1]
    %v1379 = vperm.slane %v1377, 0
    %v1381 = vadd.f32 %v1376, %v1379
    %1382 = vst [vmem:[%s8] sm:$0xff] %v1381
    // Predicated region
    $region46: #{rnn_forward.1} parent=1 // pred_check
      _
    $region47: #{rnn_forward.1} parent=1 // pred_check_branch
      %1384 = sbr.rel (0) target = $region49
    $region48: #{rnn_forward.1} parent=1 // pred_region
      _
    $region49: #{rnn_forward.1} parent=1 // pred_fallthru
      _
    // Predicated region
    $region50: #{rnn_forward.1} parent=1 // pred_check
      _
    $region51: #{rnn_forward.1} parent=1 // pred_check_branch
      %1386 = sbr.rel (0) target = $region53
    $region52: #{rnn_forward.1} parent=1 // pred_region
      _
    $region53: #{rnn_forward.1} parent=1 // pred_fallthru
      _
    %1387 = vsyncpa [#allocation3], 1
    %1388 = vsyncpa [#allocation5], 1

</llo_original>
